<compile_context>
chip_gen: v7x
topology: tpu7x:2x2x1
jax: 0.10.0
libtpu: 0.0.40
codegen_flags: <defaults>
</compile_context>

<pallas_src>
import functools

import jax
import jax.numpy as jnp
from jax.experimental import pallas as pl
from jax.experimental.pallas import tpu as pltpu


_PER_LAYER = ('ln1_w', 'ln1_b', 'qkv_w', 'qkv_b', 'proj_w', 'proj_b',
              'ln2_w', 'ln2_b', 'fc1_w', 'fc1_b', 'fc2_w', 'fc2_b')


# --------------------------------------------------------------------------- #
# helpers
# --------------------------------------------------------------------------- #
def _round_up(n, m):
    return ((n + m - 1) // m) * m


def _vmem_capacity_bytes():
    cap = 64 * 1024 * 1024                     # conservative default (v7x)
    try:
        info = pltpu.get_tpu_info()
        cap = int(getattr(info, 'vmem_capacity_bytes', cap))
    except Exception:
        pass
    return cap


def _vmem_limit(need_bytes):
    hi = min(int(0.85 * _vmem_capacity_bytes()), 100 * 1024 * 1024)
    return int(min(max(int(need_bytes), 32 * 1024 * 1024), hi))


def _layernorm(x, w, b, eps=1e-5):
    mu = jnp.mean(x, axis=-1, keepdims=True)
    var = jnp.mean((x - mu) ** 2, axis=-1, keepdims=True)
    return (x - mu) * jax.lax.rsqrt(var + eps) * w + b


# --------------------------------------------------------------------------- #
# kernel: whole transformer, grid = (batch_tile, layer)
# --------------------------------------------------------------------------- #
def _transformer_kernel(num_heads,
                        x_ref,
                        ln1_w, ln1_b, qkv_w, qkv_b, proj_w, proj_b,
                        ln2_w, ln2_b, fc1_w, fc1_b, fc2_w, fc2_b,
                        lnf_w, lnf_b, tproj,
                        y_ref,
                        acc_ref, heads_ref):
    layer = pl.program_id(1)

    # Layer 0 of each batch tile: load the embedded input into the VMEM-resident
    # residual stream.  Later layers carry acc_ref (never touches HBM).
    @pl.when(layer == 0)
    def _():
        acc_ref[...] = x_ref[...]

    x = acc_ref[...]                               # [TB, L, W] float32
    TB, L, W = x.shape
    H = num_heads
    D = W // H
    cdt = qkv_w.dtype                              # matmul input dtype (bf16)

    # ---- attention branch: x = x + attn(ln_1(x)) ----------------------------
    xn = _layernorm(x, ln1_w[...], ln1_b[...])
    qkv = jnp.dot(xn.reshape(TB * L, W).astype(cdt), qkv_w[...],
                  preferred_element_type=jnp.float32) + qkv_b[...]
    qkv = qkv.reshape(TB, L, 3 * W)

    # finite additive causal bias (hoisted out of the head loop; padded rows
    # stay NaN-free and are causally self-contained)
    row = jax.lax.broadcasted_iota(jnp.int32, (L, L), 0)
    col = jax.lax.broadcasted_iota(jnp.int32, (L, L), 1)
    bias = jnp.where(col <= row, jnp.float32(0.0), jnp.float32(-1e30))

    for hd in range(H):                            # static, unrolled head loop
        qh = qkv[..., hd * D:(hd + 1) * D].astype(cdt)       # scale pre-folded
        kh = qkv[..., W + hd * D:W + (hd + 1) * D].astype(cdt)
        vh = qkv[..., 2 * W + hd * D:2 * W + (hd + 1) * D].astype(cdt)
        s = jnp.einsum('bqd,bkd->bqk', qh, kh,
                       preferred_element_type=jnp.float32) + bias   # [TB, L, L]
        s = s - jnp.max(s, axis=-1, keepdims=True)
        p = jnp.exp(s)
        p = p * pl.reciprocal(jnp.sum(p, axis=-1, keepdims=True), approx=True)
        o = jnp.einsum('bqk,bkd->bqd', p.astype(cdt), vh,
                       preferred_element_type=jnp.float32)          # [TB, L, D]
        # lane-slice store into the concat buffer (masked vst, no XLU relayout)
        heads_ref[:, hd * D:(hd + 1) * D] = o.reshape(TB * L, D)

    # single output projection with K = W (full MXU contraction)
    attn = jnp.dot(heads_ref[...].astype(cdt), proj_w[...],
                   preferred_element_type=jnp.float32) + proj_b[...]
    x = x + attn.reshape(TB, L, W)

    # ---- MLP branch: x = x + mlp(ln_2(x)) ------------------------------------
    xn2 = _layernorm(x, ln2_w[...], ln2_b[...])
    h1 = jnp.dot(xn2.reshape(TB * L, W).astype(cdt), fc1_w[...],
                 preferred_element_type=jnp.float32) + fc1_b[...]    # [TB*L, 4W]
    h1c = h1.astype(cdt)
    g = h1c * jax.nn.sigmoid(1.702 * h1c)          # QuickGELU in matmul dtype
    h2 = jnp.dot(g, fc2_w[...],
                 preferred_element_type=jnp.float32) + fc2_b[...]    # [TB*L, W]
    x = x + h2.reshape(TB, L, W)

    acc_ref[...] = x                               # residual stream stays in VMEM

    # ---- fused epilogue: ln_final + text projection for this layer ----------
    yn = _layernorm(x, lnf_w[...], lnf_b[...])
    y = jnp.dot(yn.reshape(TB * L, W).astype(tproj.dtype), tproj[...],
                preferred_element_type=jnp.float32)
    y_ref[...] = y.reshape(TB, L, -1)


# --------------------------------------------------------------------------- #
# pallas_call wrapper
# --------------------------------------------------------------------------- #
def pallas_text_transformer(x, stacked, lnf_w, lnf_b, tproj, num_heads,
                            *, block_b=None):
    """x: [B, Lp, W] f32 embedded tokens (Lp already padded). Returns
    [n_layers, B, Lp, E] f32 (ln_final + projection applied per layer)."""
    B, Lp, W = x.shape
    nL = stacked['qkv_w'].shape[0]
    E = tproj.shape[-1]

    if block_b is None:
        # bigger batch tiles on 128-MiB parts; keep >= 2 grid steps (two v7x TCs)
        cap_bb = 16 if _vmem_capacity_bytes() >= 100 * 1024 * 1024 else 8
        block_b = max(1, min(cap_bb, -(-B // 2)))
    B_pad = _round_up(B, block_b)
    if B_pad != B:
        x = jnp.pad(x, ((0, B_pad - B), (0, 0), (0, 0)))
    grid = (B_pad // block_b, nL)                  # layer is the inner axis

    x_spec = pl.BlockSpec((block_b, Lp, W), lambda b, l: (b, 0, 0))

    def layer_spec(arr):                           # per-layer weights, indexed by l
        return pl.BlockSpec((None, arr.shape[1], arr.shape[2]),
                            lambda b, l: (l, 0, 0))

    def const_spec(arr):                           # small, grid-invariant weights
        return pl.BlockSpec(arr.shape, lambda b, l: (0, 0))

    layer_ws = [stacked[n] for n in _PER_LAYER]
    in_specs = ([x_spec] + [layer_spec(w) for w in layer_ws]
                + [const_spec(a) for a in (lnf_w, lnf_b, tproj)])
    out_spec = pl.BlockSpec((None, block_b, Lp, E), lambda b, l: (l, b, 0, 0))

    bytesz = lambda a: int(a.size) * a.dtype.itemsize
    w_layer_bytes = sum(bytesz(w) // nL for w in layer_ws)
    const_bytes = sum(bytesz(a) for a in (lnf_w, lnf_b, tproj))
    act_bytes = block_b * Lp * W * 4
    out_bytes = block_b * Lp * E * 4
    inter_bytes = block_b * Lp * (3 * W + 4 * W + 2 * W) * 4 + 3 * block_b * Lp * Lp * 4
    vmem_need = (2 * w_layer_bytes + 2 * const_bytes + 2 * act_bytes
                 + 2 * out_bytes + 2 * act_bytes + inter_bytes)

    flops = nL * (2 * B_pad * Lp * (12 * W * W + W * E) + 4 * B_pad * Lp * Lp * W)
    transcendentals = nL * (B_pad * num_heads * Lp * Lp + 4 * B_pad * Lp * W)
    bytes_accessed = (B_pad * Lp * W * 4 + nL * B_pad * Lp * E * 4
                      + nL * w_layer_bytes + const_bytes)

    out = pl.pallas_call(
        functools.partial(_transformer_kernel, num_heads),
        grid=grid,
        in_specs=in_specs,
        out_specs=out_spec,
        out_shape=jax.ShapeDtypeStruct((nL, B_pad, Lp, E), jnp.float32),
        scratch_shapes=[pltpu.VMEM((block_b, Lp, W), jnp.float32),     # residual
                        pltpu.VMEM((block_b * Lp, W), jnp.float32)],   # head concat
        compiler_params=pltpu.CompilerParams(
            dimension_semantics=("parallel", "arbitrary"),
            vmem_limit_bytes=_vmem_limit(vmem_need)),
        cost_estimate=pl.CostEstimate(
            flops=int(flops),
            transcendentals=int(transcendentals),
            bytes_accessed=int(bytes_accessed)),
    )(x, *layer_ws, lnf_w, lnf_b, tproj)
    return out[:, :B]


# --------------------------------------------------------------------------- #
# forward pass (mirrors TextEncoder.forward)
# --------------------------------------------------------------------------- #
def text_encoder_forward(tokenized_text, params, num_heads):
    """Returns [layers, B, L, output_dim] float32, like the PyTorch module."""
    x = jnp.take(params['token_embedding'], tokenized_text, axis=0)   # [B, L, W]
    x = x + params['positional_embedding'][None]
    B, L, W = x.shape

    # Pad seq length to a multiple of 16 (bf16 (16,128) tiles).  Padded query
    # rows are causally self-contained; real queries never attend padded keys.
    Lp = _round_up(L, 16)
    if Lp != L:
        x = jnp.pad(x, ((0, 0), (0, Lp - L), (0, 0)))

    y = pallas_text_transformer(x, params['stacked'],
                                params['ln_final_w'], params['ln_final_b'],
                                params['text_projection'], num_heads)
    return y[:, :, :L, :]                           # [layers, B, L, E]


# --------------------------------------------------------------------------- #
# parameter construction (torch convention) + one-time kernel-oriented prep
# --------------------------------------------------------------------------- #
def init_params(key, vocab, L, W, E, layers):
    """Torch-convention parameters (as if loaded from a CLIP checkpoint)."""
    keys = jax.random.split(key, 3 + layers)
    scale = W ** -0.5
    params = {
        'token_embedding': 0.02 * jax.random.normal(keys[0], (vocab, W), jnp.float32),
        'positional_embedding': 0.01 * jax.random.normal(keys[1], (L, W), jnp.float32),
        'ln_final_w': jnp.ones((W,), jnp.float32),
        'ln_final_b': jnp.zeros((W,), jnp.float32),
        'text_projection': scale * jax.random.normal(keys[2], (W, E), jnp.float32),
        'layers': [],
    }
    for i in range(layers):
        ks = jax.random.split(keys[3 + i], 4)
        params['layers'].append({
            'ln1_w': jnp.ones((W,), jnp.float32),
            'ln1_b': jnp.zeros((W,), jnp.float32),
            'qkv_w': scale * jax.random.normal(ks[0], (3 * W, W), jnp.float32),
            'qkv_b': jnp.zeros((3 * W,), jnp.float32),
            'proj_w': scale * jax.random.normal(ks[1], (W, W), jnp.float32),
            'proj_b': jnp.zeros((W,), jnp.float32),
            'ln2_w': jnp.ones((W,), jnp.float32),
            'ln2_b': jnp.zeros((W,), jnp.float32),
            'fc1_w': scale * jax.random.normal(ks[2], (4 * W, W), jnp.float32),
            'fc1_b': jnp.zeros((4 * W,), jnp.float32),
            'fc2_w': (4 * W) ** -0.5 * jax.random.normal(ks[3], (W, 4 * W), jnp.float32),
            'fc2_b': jnp.zeros((W,), jnp.float32),
        })
    return params


def prepare_params(raw, num_heads, matmul_dtype=jnp.bfloat16):
    """One-time host-side prep: transpose weights into x@W orientation, fold
    1/sqrt(D) into the Q columns, cast matmul weights to the matmul dtype, and
    stack the per-layer weights along a leading layer axis so the kernel can
    index them with the layer grid axis (prefetch during compute).
    Set matmul_dtype=jnp.float32 for bit-closer parity with a f32 torch ref."""
    W = raw['token_embedding'].shape[1]
    D = W // num_heads
    scale = jnp.float32(D ** -0.5)
    col_scale = jnp.concatenate([jnp.full((W,), scale, jnp.float32),
                                 jnp.ones((2 * W,), jnp.float32)])
    prepared = []
    for lyr in raw['layers']:
        qkv_w = (lyr['qkv_w'].T * col_scale[None, :]).astype(matmul_dtype)   # (W, 3W)
        qkv_b = (lyr['qkv_b'].reshape(1, -1) * col_scale[None, :]).astype(jnp.float32)
        prepared.append({
            'ln1_w': lyr['ln1_w'].reshape(1, -1).astype(jnp.float32),
            'ln1_b': lyr['ln1_b'].reshape(1, -1).astype(jnp.float32),
            'qkv_w': qkv_w,
            'qkv_b': qkv_b,
            'proj_w': lyr['proj_w'].T.astype(matmul_dtype),                  # (W, W)
            'proj_b': lyr['proj_b'].reshape(1, -1).astype(jnp.float32),
            'ln2_w': lyr['ln2_w'].reshape(1, -1).astype(jnp.float32),
            'ln2_b': lyr['ln2_b'].reshape(1, -1).astype(jnp.float32),
            'fc1_w': lyr['fc1_w'].T.astype(matmul_dtype),                    # (W, 4W)
            'fc1_b': lyr['fc1_b'].reshape(1, -1).astype(jnp.float32),
            'fc2_w': lyr['fc2_w'].T.astype(matmul_dtype),                    # (4W, W)
            'fc2_b': lyr['fc2_b'].reshape(1, -1).astype(jnp.float32),
        })
    stacked = {n: jnp.stack([p[n] for p in prepared]) for n in _PER_LAYER}
    return {
        'token_embedding': raw['token_embedding'].astype(jnp.float32),
        'positional_embedding': raw['positional_embedding'].astype(jnp.float32),
        'ln_final_w': raw['ln_final_w'].reshape(1, -1).astype(jnp.float32),
        'ln_final_b': raw['ln_final_b'].reshape(1, -1).astype(jnp.float32),
        'text_projection': raw['text_projection'].astype(matmul_dtype),
        'stacked': stacked,
    }


# --------------------------------------------------------------------------- #
# main
# --------------------------------------------------------------------------- #
if __name__ == "__main__":
    VOCAB, B, L, W, E, LAYERS, HEADS = 100, 2, 8, 32, 16, 2, 4
    key = jax.random.PRNGKey(0)
    pkey, tkey = jax.random.split(key)

    raw_params = init_params(pkey, VOCAB, L, W, E, LAYERS)
    params = prepare_params(raw_params, HEADS)           # one-time weight prep
    tokenized_text = jax.random.randint(tkey, (B, L), 0, VOCAB, dtype=jnp.int32)

    fwd = jax.jit(functools.partial(text_encoder_forward, num_heads=HEADS))
    out = jax.block_until_ready(fwd(tokenized_text, params))

    assert out.shape == (LAYERS, B, L, E), out.shape
    assert out.dtype == jnp.float32, out.dtype
    assert bool(jnp.all(jnp.isfinite(out)))
    print("KERNEL_OK")
</pallas_src>

<mosaic_0001>
module attributes {stable_mosaic.version = 11 : i64} {
  func.func @_transformer_kernel(%arg0: i32, %arg1: i32, %arg2: memref<1x16x32xf32, #tpu.memory_space<vmem>>, %arg3: memref<1x1x32xf32, #tpu.memory_space<vmem>>, %arg4: memref<1x1x32xf32, #tpu.memory_space<vmem>>, %arg5: memref<1x32x96xbf16, #tpu.memory_space<vmem>>, %arg6: memref<1x1x96xf32, #tpu.memory_space<vmem>>, %arg7: memref<1x32x32xbf16, #tpu.memory_space<vmem>>, %arg8: memref<1x1x32xf32, #tpu.memory_space<vmem>>, %arg9: memref<1x1x32xf32, #tpu.memory_space<vmem>>, %arg10: memref<1x1x32xf32, #tpu.memory_space<vmem>>, %arg11: memref<1x32x128xbf16, #tpu.memory_space<vmem>>, %arg12: memref<1x1x128xf32, #tpu.memory_space<vmem>>, %arg13: memref<1x128x32xbf16, #tpu.memory_space<vmem>>, %arg14: memref<1x1x32xf32, #tpu.memory_space<vmem>>, %arg15: memref<1x32xf32, #tpu.memory_space<vmem>>, %arg16: memref<1x32xf32, #tpu.memory_space<vmem>>, %arg17: memref<32x16xbf16, #tpu.memory_space<vmem>>, %arg18: memref<1x1x16x16xf32, #tpu.memory_space<vmem>>, %arg19: memref<1x16x32xf32, #tpu.memory_space<vmem>>, %arg20: memref<16x32xf32, #tpu.memory_space<vmem>>) attributes {dimension_semantics = [#tpu.dimension_semantics<parallel>, #tpu.dimension_semantics<arbitrary>], iteration_bounds = array<i64: 2, 2>, scalar_prefetch = 0 : i64, scratch_operands = 2 : i64, tpu.core_type = #tpu.core_type<tc>, window_params = [{transform_indices = @transform_0, window_bounds = array<i64: 1, 16, 32>}, {transform_indices = @transform_1, window_bounds = array<i64: 1, 1, 32>}, {transform_indices = @transform_2, window_bounds = array<i64: 1, 1, 32>}, {transform_indices = @transform_3, window_bounds = array<i64: 1, 32, 96>}, {transform_indices = @transform_4, window_bounds = array<i64: 1, 1, 96>}, {transform_indices = @transform_5, window_bounds = array<i64: 1, 32, 32>}, {transform_indices = @transform_6, window_bounds = array<i64: 1, 1, 32>}, {transform_indices = @transform_7, window_bounds = array<i64: 1, 1, 32>}, {transform_indices = @transform_8, window_bounds = array<i64: 1, 1, 32>}, {transform_indices = @transform_9, window_bounds = array<i64: 1, 32, 128>}, {transform_indices = @transform_10, window_bounds = array<i64: 1, 1, 128>}, {transform_indices = @transform_11, window_bounds = array<i64: 1, 128, 32>}, {transform_indices = @transform_12, window_bounds = array<i64: 1, 1, 32>}, {pipeline_mode = #tpu.pipeline_mode<synchronous>, transform_indices = @transform_13, window_bounds = array<i64: 1, 32>}, {pipeline_mode = #tpu.pipeline_mode<synchronous>, transform_indices = @transform_14, window_bounds = array<i64: 1, 32>}, {pipeline_mode = #tpu.pipeline_mode<synchronous>, transform_indices = @transform_15, window_bounds = array<i64: 32, 16>}, {transform_indices = @transform_16, window_bounds = array<i64: 1, 1, 16, 16>}]} {
    %c0_i32 = arith.constant 0 : i32
    %0 = arith.cmpi eq, %arg1, %c0_i32 : i32
    %1 = arith.extui %0 : i1 to i32
    %c0_i32_0 = arith.constant 0 : i32
    %2 = arith.cmpi ne, %1, %c0_i32_0 : i32
    scf.if %2 {
      %c0_98 = arith.constant 0 : index
      %c0_99 = arith.constant 0 : index
      %c0_100 = arith.constant 0 : index
      %241 = vector.load %arg2[%c0_98, %c0_99, %c0_100] : memref<1x16x32xf32, #tpu.memory_space<vmem>>, vector<1x16x32xf32>
      %c0_101 = arith.constant 0 : index
      %c0_102 = arith.constant 0 : index
      %c0_103 = arith.constant 0 : index
      %242 = vector.load %arg19[%c0_101, %c0_102, %c0_103] : memref<1x16x32xf32, #tpu.memory_space<vmem>>, vector<1x16x32xf32>
      tpu.vector_store %arg19[%c0_101, %c0_102, %c0_103], %241 {strides = array<i32>} : memref<1x16x32xf32, #tpu.memory_space<vmem>>, vector<1x16x32xf32>,
    } else {
    }
    %c0 = arith.constant 0 : index
    %c0_1 = arith.constant 0 : index
    %c0_2 = arith.constant 0 : index
    %3 = vector.load %arg19[%c0, %c0_1, %c0_2] : memref<1x16x32xf32, #tpu.memory_space<vmem>>, vector<1x16x32xf32>
    %c0_3 = arith.constant 0 : index
    %c0_4 = arith.constant 0 : index
    %c0_5 = arith.constant 0 : index
    %4 = vector.load %arg3[%c0_3, %c0_4, %c0_5] : memref<1x1x32xf32, #tpu.memory_space<vmem>>, vector<1x1x32xf32>
    %5 = vector.shape_cast %4 : vector<1x1x32xf32> to vector<1x32xf32>
    %c0_6 = arith.constant 0 : index
    %c0_7 = arith.constant 0 : index
    %c0_8 = arith.constant 0 : index
    %6 = vector.load %arg4[%c0_6, %c0_7, %c0_8] : memref<1x1x32xf32, #tpu.memory_space<vmem>>, vector<1x1x32xf32>
    %7 = vector.shape_cast %6 : vector<1x1x32xf32> to vector<1x32xf32>
    %cst = arith.constant dense<0.000000e+00> : vector<1x16xf32>
    %8 = vector.multi_reduction <add>, %3, %cst [2] : vector<1x16x32xf32> to vector<1x16xf32>
    %9 = vector.shape_cast %8 : vector<1x16xf32> to vector<1x16x1xf32>
    %cst_9 = arith.constant 3.200000e+01 : f32
    %10 = vector.broadcast %cst_9 : f32 to vector<1x16x1xf32>
    %11 = arith.divf %9, %10 : vector<1x16x1xf32>
    %12 = vector.broadcast %11 : vector<1x16x1xf32> to vector<1x16x32xf32>
    %13 = arith.subf %3, %12 : vector<1x16x32xf32>
    %14 = arith.mulf %13, %13 : vector<1x16x32xf32>
    %cst_10 = arith.constant dense<0.000000e+00> : vector<1x16xf32>
    %15 = vector.multi_reduction <add>, %14, %cst_10 [2] : vector<1x16x32xf32> to vector<1x16xf32>
    %16 = vector.shape_cast %15 : vector<1x16xf32> to vector<1x16x1xf32>
    %cst_11 = arith.constant 3.200000e+01 : f32
    %17 = vector.broadcast %cst_11 : f32 to vector<1x16x1xf32>
    %18 = arith.divf %16, %17 : vector<1x16x1xf32>
    %19 = vector.broadcast %11 : vector<1x16x1xf32> to vector<1x16x32xf32>
    %20 = arith.subf %3, %19 : vector<1x16x32xf32>
    %cst_12 = arith.constant 9.99999974E-6 : f32
    %21 = vector.broadcast %cst_12 : f32 to vector<1x16x1xf32>
    %22 = arith.addf %18, %21 : vector<1x16x1xf32>
    %23 = math.rsqrt %22 : vector<1x16x1xf32>
    %24 = vector.broadcast %23 : vector<1x16x1xf32> to vector<1x16x32xf32>
    %25 = arith.mulf %20, %24 : vector<1x16x32xf32>
    %26 = vector.shape_cast %5 : vector<1x32xf32> to vector<1x1x32xf32>
    %27 = vector.broadcast %26 : vector<1x1x32xf32> to vector<1x16x32xf32>
    %28 = arith.mulf %25, %27 : vector<1x16x32xf32>
    %29 = vector.shape_cast %7 : vector<1x32xf32> to vector<1x1x32xf32>
    %30 = vector.broadcast %29 : vector<1x1x32xf32> to vector<1x16x32xf32>
    %31 = arith.addf %28, %30 : vector<1x16x32xf32>
    %32 = vector.shape_cast %31 : vector<1x16x32xf32> to vector<16x32xf32>
    %33 = arith.truncf %32 : vector<16x32xf32> to vector<16x32xbf16>
    %c0_13 = arith.constant 0 : index
    %c0_14 = arith.constant 0 : index
    %c0_15 = arith.constant 0 : index
    %34 = vector.load %arg5[%c0_13, %c0_14, %c0_15] : memref<1x32x96xbf16, #tpu.memory_space<vmem>>, vector<1x32x96xbf16>
    %35 = vector.shape_cast %34 : vector<1x32x96xbf16> to vector<32x96xbf16>
    %cst_16 = arith.constant dense<0.000000e+00> : vector<16x96xf32>
    %36 = tpu.matmul %33, %35, %cst_16 {dimension_numbers = #tpu.dot_dimension_numbers<[1], [0], [0], [1], [0, 0, 1, 1], [], []>} : vector<16x32xbf16>, vector<32x96xbf16>, vector<16x96xf32> -> vector<16x96xf32>
    %c0_17 = arith.constant 0 : index
    %c0_18 = arith.constant 0 : index
    %c0_19 = arith.constant 0 : index
    %37 = vector.load %arg6[%c0_17, %c0_18, %c0_19] : memref<1x1x96xf32, #tpu.memory_space<vmem>>, vector<1x1x96xf32>
    %38 = vector.shape_cast %37 : vector<1x1x96xf32> to vector<1x96xf32>
    %39 = vector.broadcast %38 : vector<1x96xf32> to vector<16x96xf32>
    %40 = arith.addf %36, %39 : vector<16x96xf32>
    %41 = vector.shape_cast %40 : vector<16x96xf32> to vector<1x16x96xf32>
    %42 = tpu.iota {dimensions = array<i32: 0>} : vector<16x16xi32>
    %43 = tpu.iota {dimensions = array<i32: 1>} : vector<16x16xi32>
    %44 = arith.cmpi sle, %43, %42 : vector<16x16xi32>
    %cst_20 = arith.constant 0.000000e+00 : f32
    %cst_21 = arith.constant -1.000000e+30 : f32
    %45 = vector.broadcast %cst_20 : f32 to vector<16x16xf32>
    %46 = vector.broadcast %cst_21 : f32 to vector<16x16xf32>
    %47 = arith.select %44, %45, %46 : vector<16x16xi1>, vector<16x16xf32>
    %48 = vector.extract_strided_slice %41 {offsets = [0, 0, 0], sizes = [1, 16, 8], strides = [1, 1, 1]} : vector<1x16x96xf32> to vector<1x16x8xf32>
    %49 = arith.truncf %48 : vector<1x16x8xf32> to vector<1x16x8xbf16>
    %50 = vector.extract_strided_slice %41 {offsets = [0, 0, 32], sizes = [1, 16, 8], strides = [1, 1, 1]} : vector<1x16x96xf32> to vector<1x16x8xf32>
    %51 = arith.truncf %50 : vector<1x16x8xf32> to vector<1x16x8xbf16>
    %52 = vector.extract_strided_slice %41 {offsets = [0, 0, 64], sizes = [1, 16, 8], strides = [1, 1, 1]} : vector<1x16x96xf32> to vector<1x16x8xf32>
    %53 = arith.truncf %52 : vector<1x16x8xf32> to vector<1x16x8xbf16>
    "tpu.trace_start"() <{level = 10 : i32, message = "bqd,bkd->bqk"}> : () -> ()
    %cst_22 = arith.constant dense<0.000000e+00> : vector<1x16x16xf32>
    %54 = tpu.matmul %49, %51, %cst_22 {dimension_numbers = #tpu.dot_dimension_numbers<[2], [2], [1], [1], [0, 0, 0, 1, 1, 1], [0], [0]>} : vector<1x16x8xbf16>, vector<1x16x8xbf16>, vector<1x16x16xf32> -> vector<1x16x16xf32>
    "tpu.trace_stop"() : () -> ()
    %55 = vector.shape_cast %47 : vector<16x16xf32> to vector<1x16x16xf32>
    %56 = arith.addf %54, %55 : vector<1x16x16xf32>
    %cst_23 = arith.constant dense<0xFF800000> : vector<1x16xf32>
    %57 = vector.multi_reduction <maximumf>, %56, %cst_23 [2] : vector<1x16x16xf32> to vector<1x16xf32>
    %58 = vector.shape_cast %57 : vector<1x16xf32> to vector<1x16x1xf32>
    %59 = vector.broadcast %58 : vector<1x16x1xf32> to vector<1x16x16xf32>
    %60 = arith.subf %56, %59 : vector<1x16x16xf32>
    %61 = math.exp %60 : vector<1x16x16xf32>
    %cst_24 = arith.constant dense<0.000000e+00> : vector<1x16xf32>
    %62 = vector.multi_reduction <add>, %61, %cst_24 [2] : vector<1x16x16xf32> to vector<1x16xf32>
    %63 = vector.shape_cast %62 : vector<1x16xf32> to vector<1x16x1xf32>
    %64 = tpu.reciprocal %63 {approx = true} : vector<1x16x1xf32> -> vector<1x16x1xf32>
    %65 = vector.broadcast %64 : vector<1x16x1xf32> to vector<1x16x16xf32>
    %66 = arith.mulf %61, %65 : vector<1x16x16xf32>
    %67 = arith.truncf %66 : vector<1x16x16xf32> to vector<1x16x16xbf16>
    "tpu.trace_start"() <{level = 10 : i32, message = "bqk,bkd->bqd"}> : () -> ()
    %cst_25 = arith.constant dense<0.000000e+00> : vector<1x16x8xf32>
    %68 = tpu.matmul %67, %53, %cst_25 {dimension_numbers = #tpu.dot_dimension_numbers<[2], [1], [1], [2], [0, 0, 0, 1, 1, 2], [0], [0]>} : vector<1x16x16xbf16>, vector<1x16x8xbf16>, vector<1x16x8xf32> -> vector<1x16x8xf32>
    "tpu.trace_stop"() : () -> ()
    %69 = vector.shape_cast %68 : vector<1x16x8xf32> to vector<16x8xf32>
    %c0_26 = arith.constant 0 : index
    %c0_27 = arith.constant 0 : index
    %70 = vector.load %arg20[%c0_26, %c0_27] : memref<16x32xf32, #tpu.memory_space<vmem>>, vector<16x8xf32>
    tpu.vector_store %arg20[%c0_26, %c0_27], %69 {strides = array<i32>} : memref<16x32xf32, #tpu.memory_space<vmem>>, vector<16x8xf32>,
    %71 = vector.extract_strided_slice %41 {offsets = [0, 0, 8], sizes = [1, 16, 8], strides = [1, 1, 1]} : vector<1x16x96xf32> to vector<1x16x8xf32>
    %72 = arith.truncf %71 : vector<1x16x8xf32> to vector<1x16x8xbf16>
    %73 = vector.extract_strided_slice %41 {offsets = [0, 0, 40], sizes = [1, 16, 8], strides = [1, 1, 1]} : vector<1x16x96xf32> to vector<1x16x8xf32>
    %74 = arith.truncf %73 : vector<1x16x8xf32> to vector<1x16x8xbf16>
    %75 = vector.extract_strided_slice %41 {offsets = [0, 0, 72], sizes = [1, 16, 8], strides = [1, 1, 1]} : vector<1x16x96xf32> to vector<1x16x8xf32>
    %76 = arith.truncf %75 : vector<1x16x8xf32> to vector<1x16x8xbf16>
    "tpu.trace_start"() <{level = 10 : i32, message = "bqd,bkd->bqk"}> : () -> ()
    %cst_28 = arith.constant dense<0.000000e+00> : vector<1x16x16xf32>
    %77 = tpu.matmul %72, %74, %cst_28 {dimension_numbers = #tpu.dot_dimension_numbers<[2], [2], [1], [1], [0, 0, 0, 1, 1, 1], [0], [0]>} : vector<1x16x8xbf16>, vector<1x16x8xbf16>, vector<1x16x16xf32> -> vector<1x16x16xf32>
    "tpu.trace_stop"() : () -> ()
    %78 = vector.shape_cast %47 : vector<16x16xf32> to vector<1x16x16xf32>
    %79 = arith.addf %77, %78 : vector<1x16x16xf32>
    %cst_29 = arith.constant dense<0xFF800000> : vector<1x16xf32>
    %80 = vector.multi_reduction <maximumf>, %79, %cst_29 [2] : vector<1x16x16xf32> to vector<1x16xf32>
    %81 = vector.shape_cast %80 : vector<1x16xf32> to vector<1x16x1xf32>
    %82 = vector.broadcast %81 : vector<1x16x1xf32> to vector<1x16x16xf32>
    %83 = arith.subf %79, %82 : vector<1x16x16xf32>
    %84 = math.exp %83 : vector<1x16x16xf32>
    %cst_30 = arith.constant dense<0.000000e+00> : vector<1x16xf32>
    %85 = vector.multi_reduction <add>, %84, %cst_30 [2] : vector<1x16x16xf32> to vector<1x16xf32>
    %86 = vector.shape_cast %85 : vector<1x16xf32> to vector<1x16x1xf32>
    %87 = tpu.reciprocal %86 {approx = true} : vector<1x16x1xf32> -> vector<1x16x1xf32>
    %88 = vector.broadcast %87 : vector<1x16x1xf32> to vector<1x16x16xf32>
    %89 = arith.mulf %84, %88 : vector<1x16x16xf32>
    %90 = arith.truncf %89 : vector<1x16x16xf32> to vector<1x16x16xbf16>
    "tpu.trace_start"() <{level = 10 : i32, message = "bqk,bkd->bqd"}> : () -> ()
    %cst_31 = arith.constant dense<0.000000e+00> : vector<1x16x8xf32>
    %91 = tpu.matmul %90, %76, %cst_31 {dimension_numbers = #tpu.dot_dimension_numbers<[2], [1], [1], [2], [0, 0, 0, 1, 1, 2], [0], [0]>} : vector<1x16x16xbf16>, vector<1x16x8xbf16>, vector<1x16x8xf32> -> vector<1x16x8xf32>
    "tpu.trace_stop"() : () -> ()
    %92 = vector.shape_cast %91 : vector<1x16x8xf32> to vector<16x8xf32>
    %c0_32 = arith.constant 0 : index
    %c8 = arith.constant 8 : index
    %93 = vector.load %arg20[%c0_32, %c8] : memref<16x32xf32, #tpu.memory_space<vmem>>, vector<16x8xf32>
    tpu.vector_store %arg20[%c0_32, %c8], %92 {strides = array<i32>} : memref<16x32xf32, #tpu.memory_space<vmem>>, vector<16x8xf32>,
    %94 = vector.extract_strided_slice %41 {offsets = [0, 0, 16], sizes = [1, 16, 8], strides = [1, 1, 1]} : vector<1x16x96xf32> to vector<1x16x8xf32>
    %95 = arith.truncf %94 : vector<1x16x8xf32> to vector<1x16x8xbf16>
    %96 = vector.extract_strided_slice %41 {offsets = [0, 0, 48], sizes = [1, 16, 8], strides = [1, 1, 1]} : vector<1x16x96xf32> to vector<1x16x8xf32>
    %97 = arith.truncf %96 : vector<1x16x8xf32> to vector<1x16x8xbf16>
    %98 = vector.extract_strided_slice %41 {offsets = [0, 0, 80], sizes = [1, 16, 8], strides = [1, 1, 1]} : vector<1x16x96xf32> to vector<1x16x8xf32>
    %99 = arith.truncf %98 : vector<1x16x8xf32> to vector<1x16x8xbf16>
    "tpu.trace_start"() <{level = 10 : i32, message = "bqd,bkd->bqk"}> : () -> ()
    %cst_33 = arith.constant dense<0.000000e+00> : vector<1x16x16xf32>
    %100 = tpu.matmul %95, %97, %cst_33 {dimension_numbers = #tpu.dot_dimension_numbers<[2], [2], [1], [1], [0, 0, 0, 1, 1, 1], [0], [0]>} : vector<1x16x8xbf16>, vector<1x16x8xbf16>, vector<1x16x16xf32> -> vector<1x16x16xf32>
    "tpu.trace_stop"() : () -> ()
    %101 = vector.shape_cast %47 : vector<16x16xf32> to vector<1x16x16xf32>
    %102 = arith.addf %100, %101 : vector<1x16x16xf32>
    %cst_34 = arith.constant dense<0xFF800000> : vector<1x16xf32>
    %103 = vector.multi_reduction <maximumf>, %102, %cst_34 [2] : vector<1x16x16xf32> to vector<1x16xf32>
    %104 = vector.shape_cast %103 : vector<1x16xf32> to vector<1x16x1xf32>
    %105 = vector.broadcast %104 : vector<1x16x1xf32> to vector<1x16x16xf32>
    %106 = arith.subf %102, %105 : vector<1x16x16xf32>
    %107 = math.exp %106 : vector<1x16x16xf32>
    %cst_35 = arith.constant dense<0.000000e+00> : vector<1x16xf32>
    %108 = vector.multi_reduction <add>, %107, %cst_35 [2] : vector<1x16x16xf32> to vector<1x16xf32>
    %109 = vector.shape_cast %108 : vector<1x16xf32> to vector<1x16x1xf32>
    %110 = tpu.reciprocal %109 {approx = true} : vector<1x16x1xf32> -> vector<1x16x1xf32>
    %111 = vector.broadcast %110 : vector<1x16x1xf32> to vector<1x16x16xf32>
    %112 = arith.mulf %107, %111 : vector<1x16x16xf32>
    %113 = arith.truncf %112 : vector<1x16x16xf32> to vector<1x16x16xbf16>
    "tpu.trace_start"() <{level = 10 : i32, message = "bqk,bkd->bqd"}> : () -> ()
    %cst_36 = arith.constant dense<0.000000e+00> : vector<1x16x8xf32>
    %114 = tpu.matmul %113, %99, %cst_36 {dimension_numbers = #tpu.dot_dimension_numbers<[2], [1], [1], [2], [0, 0, 0, 1, 1, 2], [0], [0]>} : vector<1x16x16xbf16>, vector<1x16x8xbf16>, vector<1x16x8xf32> -> vector<1x16x8xf32>
    "tpu.trace_stop"() : () -> ()
    %115 = vector.shape_cast %114 : vector<1x16x8xf32> to vector<16x8xf32>
    %c0_37 = arith.constant 0 : index
    %c16 = arith.constant 16 : index
    %116 = vector.load %arg20[%c0_37, %c16] : memref<16x32xf32, #tpu.memory_space<vmem>>, vector<16x8xf32>
    tpu.vector_store %arg20[%c0_37, %c16], %115 {strides = array<i32>} : memref<16x32xf32, #tpu.memory_space<vmem>>, vector<16x8xf32>,
    %117 = vector.extract_strided_slice %41 {offsets = [0, 0, 24], sizes = [1, 16, 8], strides = [1, 1, 1]} : vector<1x16x96xf32> to vector<1x16x8xf32>
    %118 = arith.truncf %117 : vector<1x16x8xf32> to vector<1x16x8xbf16>
    %119 = vector.extract_strided_slice %41 {offsets = [0, 0, 56], sizes = [1, 16, 8], strides = [1, 1, 1]} : vector<1x16x96xf32> to vector<1x16x8xf32>
    %120 = arith.truncf %119 : vector<1x16x8xf32> to vector<1x16x8xbf16>
    %121 = vector.extract_strided_slice %41 {offsets = [0, 0, 88], sizes = [1, 16, 8], strides = [1, 1, 1]} : vector<1x16x96xf32> to vector<1x16x8xf32>
    %122 = arith.truncf %121 : vector<1x16x8xf32> to vector<1x16x8xbf16>
    "tpu.trace_start"() <{level = 10 : i32, message = "bqd,bkd->bqk"}> : () -> ()
    %cst_38 = arith.constant dense<0.000000e+00> : vector<1x16x16xf32>
    %123 = tpu.matmul %118, %120, %cst_38 {dimension_numbers = #tpu.dot_dimension_numbers<[2], [2], [1], [1], [0, 0, 0, 1, 1, 1], [0], [0]>} : vector<1x16x8xbf16>, vector<1x16x8xbf16>, vector<1x16x16xf32> -> vector<1x16x16xf32>
    "tpu.trace_stop"() : () -> ()
    %124 = vector.shape_cast %47 : vector<16x16xf32> to vector<1x16x16xf32>
    %125 = arith.addf %123, %124 : vector<1x16x16xf32>
    %cst_39 = arith.constant dense<0xFF800000> : vector<1x16xf32>
    %126 = vector.multi_reduction <maximumf>, %125, %cst_39 [2] : vector<1x16x16xf32> to vector<1x16xf32>
    %127 = vector.shape_cast %126 : vector<1x16xf32> to vector<1x16x1xf32>
    %128 = vector.broadcast %127 : vector<1x16x1xf32> to vector<1x16x16xf32>
    %129 = arith.subf %125, %128 : vector<1x16x16xf32>
    %130 = math.exp %129 : vector<1x16x16xf32>
    %cst_40 = arith.constant dense<0.000000e+00> : vector<1x16xf32>
    %131 = vector.multi_reduction <add>, %130, %cst_40 [2] : vector<1x16x16xf32> to vector<1x16xf32>
    %132 = vector.shape_cast %131 : vector<1x16xf32> to vector<1x16x1xf32>
    %133 = tpu.reciprocal %132 {approx = true} : vector<1x16x1xf32> -> vector<1x16x1xf32>
    %134 = vector.broadcast %133 : vector<1x16x1xf32> to vector<1x16x16xf32>
    %135 = arith.mulf %130, %134 : vector<1x16x16xf32>
    %136 = arith.truncf %135 : vector<1x16x16xf32> to vector<1x16x16xbf16>
    "tpu.trace_start"() <{level = 10 : i32, message = "bqk,bkd->bqd"}> : () -> ()
    %cst_41 = arith.constant dense<0.000000e+00> : vector<1x16x8xf32>
    %137 = tpu.matmul %136, %122, %cst_41 {dimension_numbers = #tpu.dot_dimension_numbers<[2], [1], [1], [2], [0, 0, 0, 1, 1, 2], [0], [0]>} : vector<1x16x16xbf16>, vector<1x16x8xbf16>, vector<1x16x8xf32> -> vector<1x16x8xf32>
    "tpu.trace_stop"() : () -> ()
    %138 = vector.shape_cast %137 : vector<1x16x8xf32> to vector<16x8xf32>
    %c0_42 = arith.constant 0 : index
    %c24 = arith.constant 24 : index
    %139 = vector.load %arg20[%c0_42, %c24] : memref<16x32xf32, #tpu.memory_space<vmem>>, vector<16x8xf32>
    tpu.vector_store %arg20[%c0_42, %c24], %138 {strides = array<i32>} : memref<16x32xf32, #tpu.memory_space<vmem>>, vector<16x8xf32>,
    %c0_43 = arith.constant 0 : index
    %c0_44 = arith.constant 0 : index
    %140 = vector.load %arg20[%c0_43, %c0_44] : memref<16x32xf32, #tpu.memory_space<vmem>>, vector<16x32xf32>
    %141 = arith.truncf %140 : vector<16x32xf32> to vector<16x32xbf16>
    %c0_45 = arith.constant 0 : index
    %c0_46 = arith.constant 0 : index
    %c0_47 = arith.constant 0 : index
    %142 = vector.load %arg7[%c0_45, %c0_46, %c0_47] : memref<1x32x32xbf16, #tpu.memory_space<vmem>>, vector<1x32x32xbf16>
    %143 = vector.shape_cast %142 : vector<1x32x32xbf16> to vector<32x32xbf16>
    %cst_48 = arith.constant dense<0.000000e+00> : vector<16x32xf32>
    %144 = tpu.matmul %141, %143, %cst_48 {dimension_numbers = #tpu.dot_dimension_numbers<[1], [0], [0], [1], [0, 0, 1, 1], [], []>} : vector<16x32xbf16>, vector<32x32xbf16>, vector<16x32xf32> -> vector<16x32xf32>
    %c0_49 = arith.constant 0 : index
    %c0_50 = arith.constant 0 : index
    %c0_51 = arith.constant 0 : index
    %145 = vector.load %arg8[%c0_49, %c0_50, %c0_51] : memref<1x1x32xf32, #tpu.memory_space<vmem>>, vector<1x1x32xf32>
    %146 = vector.shape_cast %145 : vector<1x1x32xf32> to vector<1x32xf32>
    %147 = vector.broadcast %146 : vector<1x32xf32> to vector<16x32xf32>
    %148 = arith.addf %144, %147 : vector<16x32xf32>
    %149 = vector.shape_cast %148 : vector<16x32xf32> to vector<1x16x32xf32>
    %150 = arith.addf %3, %149 : vector<1x16x32xf32>
    %c0_52 = arith.constant 0 : index
    %c0_53 = arith.constant 0 : index
    %c0_54 = arith.constant 0 : index
    %151 = vector.load %arg9[%c0_52, %c0_53, %c0_54] : memref<1x1x32xf32, #tpu.memory_space<vmem>>, vector<1x1x32xf32>
    %152 = vector.shape_cast %151 : vector<1x1x32xf32> to vector<1x32xf32>
    %c0_55 = arith.constant 0 : index
    %c0_56 = arith.constant 0 : index
    %c0_57 = arith.constant 0 : index
    %153 = vector.load %arg10[%c0_55, %c0_56, %c0_57] : memref<1x1x32xf32, #tpu.memory_space<vmem>>, vector<1x1x32xf32>
    %154 = vector.shape_cast %153 : vector<1x1x32xf32> to vector<1x32xf32>
    %cst_58 = arith.constant dense<0.000000e+00> : vector<1x16xf32>
    %155 = vector.multi_reduction <add>, %150, %cst_58 [2] : vector<1x16x32xf32> to vector<1x16xf32>
    %156 = vector.shape_cast %155 : vector<1x16xf32> to vector<1x16x1xf32>
    %cst_59 = arith.constant 3.200000e+01 : f32
    %157 = vector.broadcast %cst_59 : f32 to vector<1x16x1xf32>
    %158 = arith.divf %156, %157 : vector<1x16x1xf32>
    %159 = vector.broadcast %158 : vector<1x16x1xf32> to vector<1x16x32xf32>
    %160 = arith.subf %150, %159 : vector<1x16x32xf32>
    %161 = arith.mulf %160, %160 : vector<1x16x32xf32>
    %cst_60 = arith.constant dense<0.000000e+00> : vector<1x16xf32>
    %162 = vector.multi_reduction <add>, %161, %cst_60 [2] : vector<1x16x32xf32> to vector<1x16xf32>
    %163 = vector.shape_cast %162 : vector<1x16xf32> to vector<1x16x1xf32>
    %cst_61 = arith.constant 3.200000e+01 : f32
    %164 = vector.broadcast %cst_61 : f32 to vector<1x16x1xf32>
    %165 = arith.divf %163, %164 : vector<1x16x1xf32>
    %166 = vector.broadcast %158 : vector<1x16x1xf32> to vector<1x16x32xf32>
    %167 = arith.subf %150, %166 : vector<1x16x32xf32>
    %cst_62 = arith.constant 9.99999974E-6 : f32
    %168 = vector.broadcast %cst_62 : f32 to vector<1x16x1xf32>
    %169 = arith.addf %165, %168 : vector<1x16x1xf32>
    %170 = math.rsqrt %169 : vector<1x16x1xf32>
    %171 = vector.broadcast %170 : vector<1x16x1xf32> to vector<1x16x32xf32>
    %172 = arith.mulf %167, %171 : vector<1x16x32xf32>
    %173 = vector.shape_cast %152 : vector<1x32xf32> to vector<1x1x32xf32>
    %174 = vector.broadcast %173 : vector<1x1x32xf32> to vector<1x16x32xf32>
    %175 = arith.mulf %172, %174 : vector<1x16x32xf32>
    %176 = vector.shape_cast %154 : vector<1x32xf32> to vector<1x1x32xf32>
    %177 = vector.broadcast %176 : vector<1x1x32xf32> to vector<1x16x32xf32>
    %178 = arith.addf %175, %177 : vector<1x16x32xf32>
    %179 = vector.shape_cast %178 : vector<1x16x32xf32> to vector<16x32xf32>
    %180 = arith.truncf %179 : vector<16x32xf32> to vector<16x32xbf16>
    %c0_63 = arith.constant 0 : index
    %c0_64 = arith.constant 0 : index
    %c0_65 = arith.constant 0 : index
    %181 = vector.load %arg11[%c0_63, %c0_64, %c0_65] : memref<1x32x128xbf16, #tpu.memory_space<vmem>>, vector<1x32x128xbf16>
    %182 = vector.shape_cast %181 : vector<1x32x128xbf16> to vector<32x128xbf16>
    %cst_66 = arith.constant dense<0.000000e+00> : vector<16x128xf32>
    %183 = tpu.matmul %180, %182, %cst_66 {dimension_numbers = #tpu.dot_dimension_numbers<[1], [0], [0], [1], [0, 0, 1, 1], [], []>} : vector<16x32xbf16>, vector<32x128xbf16>, vector<16x128xf32> -> vector<16x128xf32>
    %c0_67 = arith.constant 0 : index
    %c0_68 = arith.constant 0 : index
    %c0_69 = arith.constant 0 : index
    %184 = vector.load %arg12[%c0_67, %c0_68, %c0_69] : memref<1x1x128xf32, #tpu.memory_space<vmem>>, vector<1x1x128xf32>
    %185 = vector.shape_cast %184 : vector<1x1x128xf32> to vector<1x128xf32>
    %186 = vector.broadcast %185 : vector<1x128xf32> to vector<16x128xf32>
    %187 = arith.addf %183, %186 : vector<16x128xf32>
    %188 = arith.truncf %187 : vector<16x128xf32> to vector<16x128xbf16>
    %cst_70 = arith.constant 1.703130e+00 : bf16
    %189 = vector.broadcast %cst_70 : bf16 to vector<16x128xbf16>
    %190 = arith.mulf %189, %188 : vector<16x128xbf16>
    %191 = arith.negf %190 : vector<16x128xbf16>
    %192 = math.exp %191 : vector<16x128xbf16>
    %cst_71 = arith.constant 1.000000e+00 : bf16
    %193 = vector.broadcast %cst_71 : bf16 to vector<16x128xbf16>
    %194 = arith.addf %193, %192 : vector<16x128xbf16>
    %195 = arith.divf %193, %194 : vector<16x128xbf16>
    %196 = arith.mulf %188, %195 : vector<16x128xbf16>
    %c0_72 = arith.constant 0 : index
    %c0_73 = arith.constant 0 : index
    %c0_74 = arith.constant 0 : index
    %197 = vector.load %arg13[%c0_72, %c0_73, %c0_74] : memref<1x128x32xbf16, #tpu.memory_space<vmem>>, vector<1x128x32xbf16>
    %198 = vector.shape_cast %197 : vector<1x128x32xbf16> to vector<128x32xbf16>
    %cst_75 = arith.constant dense<0.000000e+00> : vector<16x32xf32>
    %199 = tpu.matmul %196, %198, %cst_75 {dimension_numbers = #tpu.dot_dimension_numbers<[1], [0], [0], [1], [0, 0, 1, 1], [], []>} : vector<16x128xbf16>, vector<128x32xbf16>, vector<16x32xf32> -> vector<16x32xf32>
    %c0_76 = arith.constant 0 : index
    %c0_77 = arith.constant 0 : index
    %c0_78 = arith.constant 0 : index
    %200 = vector.load %arg14[%c0_76, %c0_77, %c0_78] : memref<1x1x32xf32, #tpu.memory_space<vmem>>, vector<1x1x32xf32>
    %201 = vector.shape_cast %200 : vector<1x1x32xf32> to vector<1x32xf32>
    %202 = vector.broadcast %201 : vector<1x32xf32> to vector<16x32xf32>
    %203 = arith.addf %199, %202 : vector<16x32xf32>
    %204 = vector.shape_cast %203 : vector<16x32xf32> to vector<1x16x32xf32>
    %205 = arith.addf %150, %204 : vector<1x16x32xf32>
    %c0_79 = arith.constant 0 : index
    %c0_80 = arith.constant 0 : index
    %c0_81 = arith.constant 0 : index
    %206 = vector.load %arg19[%c0_79, %c0_80, %c0_81] : memref<1x16x32xf32, #tpu.memory_space<vmem>>, vector<1x16x32xf32>
    tpu.vector_store %arg19[%c0_79, %c0_80, %c0_81], %205 {strides = array<i32>} : memref<1x16x32xf32, #tpu.memory_space<vmem>>, vector<1x16x32xf32>,
    %c0_82 = arith.constant 0 : index
    %c0_83 = arith.constant 0 : index
    %207 = vector.load %arg15[%c0_82, %c0_83] : memref<1x32xf32, #tpu.memory_space<vmem>>, vector<1x32xf32>
    %c0_84 = arith.constant 0 : index
    %c0_85 = arith.constant 0 : index
    %208 = vector.load %arg16[%c0_84, %c0_85] : memref<1x32xf32, #tpu.memory_space<vmem>>, vector<1x32xf32>
    %cst_86 = arith.constant dense<0.000000e+00> : vector<1x16xf32>
    %209 = vector.multi_reduction <add>, %205, %cst_86 [2] : vector<1x16x32xf32> to vector<1x16xf32>
    %210 = vector.shape_cast %209 : vector<1x16xf32> to vector<1x16x1xf32>
    %cst_87 = arith.constant 3.200000e+01 : f32
    %211 = vector.broadcast %cst_87 : f32 to vector<1x16x1xf32>
    %212 = arith.divf %210, %211 : vector<1x16x1xf32>
    %213 = vector.broadcast %212 : vector<1x16x1xf32> to vector<1x16x32xf32>
    %214 = arith.subf %205, %213 : vector<1x16x32xf32>
    %215 = arith.mulf %214, %214 : vector<1x16x32xf32>
    %cst_88 = arith.constant dense<0.000000e+00> : vector<1x16xf32>
    %216 = vector.multi_reduction <add>, %215, %cst_88 [2] : vector<1x16x32xf32> to vector<1x16xf32>
    %217 = vector.shape_cast %216 : vector<1x16xf32> to vector<1x16x1xf32>
    %cst_89 = arith.constant 3.200000e+01 : f32
    %218 = vector.broadcast %cst_89 : f32 to vector<1x16x1xf32>
    %219 = arith.divf %217, %218 : vector<1x16x1xf32>
    %220 = vector.broadcast %212 : vector<1x16x1xf32> to vector<1x16x32xf32>
    %221 = arith.subf %205, %220 : vector<1x16x32xf32>
    %cst_90 = arith.constant 9.99999974E-6 : f32
    %222 = vector.broadcast %cst_90 : f32 to vector<1x16x1xf32>
    %223 = arith.addf %219, %222 : vector<1x16x1xf32>
    %224 = math.rsqrt %223 : vector<1x16x1xf32>
    %225 = vector.broadcast %224 : vector<1x16x1xf32> to vector<1x16x32xf32>
    %226 = arith.mulf %221, %225 : vector<1x16x32xf32>
    %227 = vector.shape_cast %207 : vector<1x32xf32> to vector<1x1x32xf32>
    %228 = vector.broadcast %227 : vector<1x1x32xf32> to vector<1x16x32xf32>
    %229 = arith.mulf %226, %228 : vector<1x16x32xf32>
    %230 = vector.shape_cast %208 : vector<1x32xf32> to vector<1x1x32xf32>
    %231 = vector.broadcast %230 : vector<1x1x32xf32> to vector<1x16x32xf32>
    %232 = arith.addf %229, %231 : vector<1x16x32xf32>
    %233 = vector.shape_cast %232 : vector<1x16x32xf32> to vector<16x32xf32>
    %234 = arith.truncf %233 : vector<16x32xf32> to vector<16x32xbf16>
    %c0_91 = arith.constant 0 : index
    %c0_92 = arith.constant 0 : index
    %235 = vector.load %arg17[%c0_91, %c0_92] : memref<32x16xbf16, #tpu.memory_space<vmem>>, vector<32x16xbf16>
    %cst_93 = arith.constant dense<0.000000e+00> : vector<16x16xf32>
    %236 = tpu.matmul %234, %235, %cst_93 {dimension_numbers = #tpu.dot_dimension_numbers<[1], [0], [0], [1], [0, 0, 1, 1], [], []>} : vector<16x32xbf16>, vector<32x16xbf16>, vector<16x16xf32> -> vector<16x16xf32>
    %237 = vector.shape_cast %236 : vector<16x16xf32> to vector<1x16x16xf32>
    %c0_94 = arith.constant 0 : index
    %c0_95 = arith.constant 0 : index
    %c0_96 = arith.constant 0 : index
    %c0_97 = arith.constant 0 : index
    %238 = vector.load %arg18[%c0_94, %c0_95, %c0_96, %c0_97] : memref<1x1x16x16xf32, #tpu.memory_space<vmem>>, vector<1x1x16x16xf32>
    %239 = vector.shape_cast %238 : vector<1x1x16x16xf32> to vector<1x16x16xf32>
    %240 = vector.shape_cast %237 : vector<1x16x16xf32> to vector<1x1x16x16xf32>
    tpu.vector_store %arg18[%c0_94, %c0_95, %c0_96, %c0_97], %240 {strides = array<i32>} : memref<1x1x16x16xf32, #tpu.memory_space<vmem>>, vector<1x1x16x16xf32>,
    return
  }
  func.func @transform_0(%arg0: i32, %arg1: i32) -> (i32, i32, i32) {
    %c0_i32 = arith.constant 0 : i32
    %c0_i32_0 = arith.constant 0 : i32
    %c0_i32_1 = arith.constant 0 : i32
    return %arg0, %c0_i32, %c0_i32_0 : i32, i32, i32
  }
  func.func @transform_1(%arg0: i32, %arg1: i32) -> (i32, i32, i32) {
    %c0_i32 = arith.constant 0 : i32
    %c0_i32_0 = arith.constant 0 : i32
    %c0_i32_1 = arith.constant 0 : i32
    return %arg1, %c0_i32, %c0_i32_0 : i32, i32, i32
  }
  func.func @transform_2(%arg0: i32, %arg1: i32) -> (i32, i32, i32) {
    %c0_i32 = arith.constant 0 : i32
    %c0_i32_0 = arith.constant 0 : i32
    %c0_i32_1 = arith.constant 0 : i32
    return %arg1, %c0_i32, %c0_i32_0 : i32, i32, i32
  }
  func.func @transform_3(%arg0: i32, %arg1: i32) -> (i32, i32, i32) {
    %c0_i32 = arith.constant 0 : i32
    %c0_i32_0 = arith.constant 0 : i32
    %c0_i32_1 = arith.constant 0 : i32
    return %arg1, %c0_i32, %c0_i32_0 : i32, i32, i32
  }
  func.func @transform_4(%arg0: i32, %arg1: i32) -> (i32, i32, i32) {
    %c0_i32 = arith.constant 0 : i32
    %c0_i32_0 = arith.constant 0 : i32
    %c0_i32_1 = arith.constant 0 : i32
    return %arg1, %c0_i32, %c0_i32_0 : i32, i32, i32
  }
  func.func @transform_5(%arg0: i32, %arg1: i32) -> (i32, i32, i32) {
    %c0_i32 = arith.constant 0 : i32
    %c0_i32_0 = arith.constant 0 : i32
    %c0_i32_1 = arith.constant 0 : i32
    return %arg1, %c0_i32, %c0_i32_0 : i32, i32, i32
  }
  func.func @transform_6(%arg0: i32, %arg1: i32) -> (i32, i32, i32) {
    %c0_i32 = arith.constant 0 : i32
    %c0_i32_0 = arith.constant 0 : i32
    %c0_i32_1 = arith.constant 0 : i32
    return %arg1, %c0_i32, %c0_i32_0 : i32, i32, i32
  }
  func.func @transform_7(%arg0: i32, %arg1: i32) -> (i32, i32, i32) {
    %c0_i32 = arith.constant 0 : i32
    %c0_i32_0 = arith.constant 0 : i32
    %c0_i32_1 = arith.constant 0 : i32
    return %arg1, %c0_i32, %c0_i32_0 : i32, i32, i32
  }
  func.func @transform_8(%arg0: i32, %arg1: i32) -> (i32, i32, i32) {
    %c0_i32 = arith.constant 0 : i32
    %c0_i32_0 = arith.constant 0 : i32
    %c0_i32_1 = arith.constant 0 : i32
    return %arg1, %c0_i32, %c0_i32_0 : i32, i32, i32
  }
  func.func @transform_9(%arg0: i32, %arg1: i32) -> (i32, i32, i32) {
    %c0_i32 = arith.constant 0 : i32
    %c0_i32_0 = arith.constant 0 : i32
    %c0_i32_1 = arith.constant 0 : i32
    return %arg1, %c0_i32, %c0_i32_0 : i32, i32, i32
  }
  func.func @transform_10(%arg0: i32, %arg1: i32) -> (i32, i32, i32) {
    %c0_i32 = arith.constant 0 : i32
    %c0_i32_0 = arith.constant 0 : i32
    %c0_i32_1 = arith.constant 0 : i32
    return %arg1, %c0_i32, %c0_i32_0 : i32, i32, i32
  }
  func.func @transform_11(%arg0: i32, %arg1: i32) -> (i32, i32, i32) {
    %c0_i32 = arith.constant 0 : i32
    %c0_i32_0 = arith.constant 0 : i32
    %c0_i32_1 = arith.constant 0 : i32
    return %arg1, %c0_i32, %c0_i32_0 : i32, i32, i32
  }
  func.func @transform_12(%arg0: i32, %arg1: i32) -> (i32, i32, i32) {
    %c0_i32 = arith.constant 0 : i32
    %c0_i32_0 = arith.constant 0 : i32
    %c0_i32_1 = arith.constant 0 : i32
    return %arg1, %c0_i32, %c0_i32_0 : i32, i32, i32
  }
  func.func @transform_13(%arg0: i32, %arg1: i32) -> (i32, i32) {
    %c0_i32 = arith.constant 0 : i32
    %c0_i32_0 = arith.constant 0 : i32
    %c0_i32_1 = arith.constant 0 : i32
    return %c0_i32, %c0_i32_0 : i32, i32
  }
  func.func @transform_14(%arg0: i32, %arg1: i32) -> (i32, i32) {
    %c0_i32 = arith.constant 0 : i32
    %c0_i32_0 = arith.constant 0 : i32
    %c0_i32_1 = arith.constant 0 : i32
    return %c0_i32, %c0_i32_0 : i32, i32
  }
  func.func @transform_15(%arg0: i32, %arg1: i32) -> (i32, i32) {
    %c0_i32 = arith.constant 0 : i32
    %c0_i32_0 = arith.constant 0 : i32
    %c0_i32_1 = arith.constant 0 : i32
    return %c0_i32, %c0_i32_0 : i32, i32
  }
  func.func @transform_16(%arg0: i32, %arg1: i32) -> (i32, i32, i32, i32) {
    %c0_i32 = arith.constant 0 : i32
    %c0_i32_0 = arith.constant 0 : i32
    %c0_i32_1 = arith.constant 0 : i32
    return %arg1, %arg0, %c0_i32, %c0_i32_0 : i32, i32, i32, i32
  }
}

</mosaic_0001>

<llo_original>
// kernel: text_encoder_forward.1
$region0: #{text_encoder_forward.1}
  #allocation0 [shape = 'u32[]', space=smem, size = 0x4, offset = 0x4, fixed_abs, tag = 'smem constant byte address 0x4 - core index']
  #allocation1 [shape = 'u32[144,128]{1,0:T(1,128)}', space=vmem, size = 0x12000, scoped, tag = 'internal scratch']
  #allocation2 [shape = 'f32[1,16,32]{2,1,0:T(8,128)}', space=vmem, size = 0x2000, scoped, tag = 'scratch operand']
  #allocation3 [shape = 'f32[16,32]{1,0:T(8,128)}', space=vmem, size = 0x2000, scoped, tag = 'scratch operand']
  %s0 = inlined_call_operand.vmem [shape: f32[2,16,32], index: 0, kind: input, shape index: {}]
  %s1 = inlined_call_operand.vmem [shape: f32[2,1,32], index: 1, kind: input, shape index: {}]
  %s2 = inlined_call_operand.vmem [shape: f32[2,1,32], index: 2, kind: input, shape index: {}]
  %s3 = inlined_call_operand.vmem [shape: bf16[2,32,96], index: 3, kind: input, shape index: {}]
  %s4 = inlined_call_operand.vmem [shape: f32[2,1,96], index: 4, kind: input, shape index: {}]
  %s5 = inlined_call_operand.vmem [shape: bf16[2,32,32], index: 5, kind: input, shape index: {}]
  %s6 = inlined_call_operand.vmem [shape: f32[2,1,32], index: 6, kind: input, shape index: {}]
  %s7 = inlined_call_operand.vmem [shape: f32[2,1,32], index: 7, kind: input, shape index: {}]
  %s8 = inlined_call_operand.vmem [shape: f32[2,1,32], index: 8, kind: input, shape index: {}]
  %s9 = inlined_call_operand.vmem [shape: bf16[2,32,128], index: 9, kind: input, shape index: {}]
  %s10 = inlined_call_operand.vmem [shape: f32[2,1,128], index: 10, kind: input, shape index: {}]
  %s11 = inlined_call_operand.vmem [shape: bf16[2,128,32], index: 11, kind: input, shape index: {}]
  %s12 = inlined_call_operand.vmem [shape: f32[2,1,32], index: 12, kind: input, shape index: {}]
  %s13 = inlined_call_operand.vmem [shape: f32[1,32], index: 13, kind: input, shape index: {}]
  %s14 = inlined_call_operand.vmem [shape: f32[1,32], index: 14, kind: input, shape index: {}]
  %s15 = inlined_call_operand.vmem [shape: bf16[32,16], index: 15, kind: input, shape index: {}]
  %s16 = inlined_call_operand.vmem [shape: f32[2,2,16,16], index: 16, kind: output, shape index: {}]
  %s17 = sld [smem:[#allocation0]]
  $region101: #{text_encoder_forward.1} parent=0
    _
  %s19 = ssub.s32 1, %s17
  %s20 = scalar_select 0, %s19, %s17
  loop: start=0, step=1, limit=6
  $region2: #{text_encoder_forward.1} parent=0 // loop_pre_header
    _
  $region3: #{text_encoder_forward.1} parent=0 // loop_header
    %s22 = sphi 0, %s26
    %p23 = scmp.ge.s32.totalorder %s22, 6
    %s29 = sphi 0, %s41
    %s30 = sphi 0, %s37
    %s31 = sphi 0, %s29
    %s32 = sphi 0, %s30
    %s33 = sphi 0, %s31
    %s34 = sphi 0, %s32
    %s44 = sphi 0, %s46
    %s47 = sphi 0, %s44
    %s48 = sphi 0, %s47
    %s64 = sphi 0, %s48
    %s70 = sphi 0, %s72
    %s73 = sphi 0, %s70
    %s74 = sphi 0, %s73
    %s90 = sphi 0, %s74
    %s96 = sphi 0, %s98
    %s99 = sphi 0, %s96
    %s100 = sphi 0, %s99
    %s116 = sphi 0, %s100
    %s122 = sphi 0, %s124
    %s125 = sphi 0, %s122
    %s126 = sphi 0, %s125
    %s142 = sphi 0, %s126
    %s148 = sphi 0, %s150
    %s151 = sphi 0, %s148
    %s152 = sphi 0, %s151
    %s168 = sphi 0, %s152
    %s174 = sphi 0, %s176
    %s177 = sphi 0, %s174
    %s178 = sphi 0, %s177
    %s194 = sphi 0, %s178
    %s200 = sphi 0, %s202
    %s203 = sphi 0, %s200
    %s204 = sphi 0, %s203
    %s220 = sphi 0, %s204
    %s226 = sphi 0, %s228
    %s229 = sphi 0, %s226
    %s230 = sphi 0, %s229
    %s246 = sphi 0, %s230
    %s252 = sphi 0, %s254
    %s255 = sphi 0, %s252
    %s256 = sphi 0, %s255
    %s272 = sphi 0, %s256
    %s278 = sphi 0, %s280
    %s281 = sphi 0, %s278
    %s282 = sphi 0, %s281
    %s298 = sphi 0, %s282
    %s304 = sphi 0, %s306
    %s307 = sphi 0, %s304
    %s308 = sphi 0, %s307
    %s324 = sphi 0, %s308
    %s330 = sphi 0, %s332
    %s333 = sphi 0, %s330
    %s334 = sphi 0, %s333
    %s350 = sphi 0, %s334
    %s356 = sphi 0, %s358
    %s359 = sphi 0, %s356
    %s360 = sphi 0, %s359
    %s376 = sphi 0, %s360
    %s380 = sphi 0, %s380
    %s382 = sphi 0, %s380
    %s383 = sphi 0, %s382
    %s397 = sphi 0, %s383
    %s401 = sphi 0, %s401
    %s403 = sphi 0, %s401
    %s404 = sphi 0, %s403
    %s418 = sphi 0, %s404
    %s422 = sphi 0, %s422
    %s424 = sphi 0, %s422
    %s425 = sphi 0, %s424
    %s439 = sphi 0, %s425
    %s447 = sphi 0, %s449
    %s450 = sphi 0, %s447
    %s451 = sphi 0, %s450
    %s467 = sphi 0, %s451
  $region4: #{text_encoder_forward.1} parent=0 // loop_header_branch
    %25 = sbr.rel (%p23) target = $region8
  $region5: #{text_encoder_forward.1} parent=0 // loop_body
    %s27 = ssub.s32 %s22, 1
    %s28 = ssub.s32 %s22, 2
    %s35 = sadd.s32 1, %s30
    %p36 = scmp.ge.s32.totalorder %s35, 2
    %s37 = scalar_select %p36, 0, %s35
    %s38 = sadd.s32 1, %s29
    %s39 = scalar_select %p36, %s38, %s29
    %p40 = scmp.ge.s32.totalorder %s39, 2
    %s41 = scalar_select %p40, 0, %s39
    %s42 = ssub.s32 %s29, %s41
    %p43 = scmp.eq.s32.totalorder %s42, 0
    %s45 = sadd.s32 %s44, 1
    %s46 = scalar_select %p43, %s44, %s45
    %p49 = pneg %p43
    %p50 = scmp.eq.s32.totalorder %s22, 3
    %p51 = por %p49, %p50
    %p52 = scmp.ne.s32.totalorder %s44, %s47
    %p53 = scmp.eq.s32.totalorder %s22, 0
    %p54 = por %p52, %p53
    %p55 = scmp.ne.s32.totalorder %s44, %s47
    %p56 = scmp.eq.s32.totalorder %s27, 3
    %p57 = por %p55, %p56
    %p58 = scmp.ne.s32.totalorder %s47, %s48
    %p59 = scmp.eq.s32.totalorder %s27, 0
    %p60 = por %p58, %p59
    %p61 = scmp.ne.s32.totalorder %s47, %s48
    %p62 = scmp.eq.s32.totalorder %s28, 3
    %p63 = por %p61, %p62
    %p65 = scmp.ne.s32.totalorder %s48, %s64
    %p66 = scmp.eq.s32.totalorder %s28, 0
    %p67 = por %p65, %p66
    %s68 = ssub.s32 %s30, %s37
    %p69 = scmp.eq.s32.totalorder %s68, 0
    %s71 = sadd.s32 %s70, 1
    %s72 = scalar_select %p69, %s70, %s71
    %p75 = pneg %p69
    %p76 = scmp.eq.s32.totalorder %s22, 3
    %p77 = por %p75, %p76
    %p78 = scmp.ne.s32.totalorder %s70, %s73
    %p79 = scmp.eq.s32.totalorder %s22, 0
    %p80 = por %p78, %p79
    %p81 = scmp.ne.s32.totalorder %s70, %s73
    %p82 = scmp.eq.s32.totalorder %s27, 3
    %p83 = por %p81, %p82
    %p84 = scmp.ne.s32.totalorder %s73, %s74
    %p85 = scmp.eq.s32.totalorder %s27, 0
    %p86 = por %p84, %p85
    %p87 = scmp.ne.s32.totalorder %s73, %s74
    %p88 = scmp.eq.s32.totalorder %s28, 3
    %p89 = por %p87, %p88
    %p91 = scmp.ne.s32.totalorder %s74, %s90
    %p92 = scmp.eq.s32.totalorder %s28, 0
    %p93 = por %p91, %p92
    %s94 = ssub.s32 %s30, %s37
    %p95 = scmp.eq.s32.totalorder %s94, 0
    %s97 = sadd.s32 %s96, 1
    %s98 = scalar_select %p95, %s96, %s97
    %p101 = pneg %p95
    %p102 = scmp.eq.s32.totalorder %s22, 3
    %p103 = por %p101, %p102
    %p104 = scmp.ne.s32.totalorder %s96, %s99
    %p105 = scmp.eq.s32.totalorder %s22, 0
    %p106 = por %p104, %p105
    %p107 = scmp.ne.s32.totalorder %s96, %s99
    %p108 = scmp.eq.s32.totalorder %s27, 3
    %p109 = por %p107, %p108
    %p110 = scmp.ne.s32.totalorder %s99, %s100
    %p111 = scmp.eq.s32.totalorder %s27, 0
    %p112 = por %p110, %p111
    %p113 = scmp.ne.s32.totalorder %s99, %s100
    %p114 = scmp.eq.s32.totalorder %s28, 3
    %p115 = por %p113, %p114
    %p117 = scmp.ne.s32.totalorder %s100, %s116
    %p118 = scmp.eq.s32.totalorder %s28, 0
    %p119 = por %p117, %p118
    %s120 = ssub.s32 %s30, %s37
    %p121 = scmp.eq.s32.totalorder %s120, 0
    %s123 = sadd.s32 %s122, 1
    %s124 = scalar_select %p121, %s122, %s123
    %p127 = pneg %p121
    %p128 = scmp.eq.s32.totalorder %s22, 3
    %p129 = por %p127, %p128
    %p130 = scmp.ne.s32.totalorder %s122, %s125
    %p131 = scmp.eq.s32.totalorder %s22, 0
    %p132 = por %p130, %p131
    %p133 = scmp.ne.s32.totalorder %s122, %s125
    %p134 = scmp.eq.s32.totalorder %s27, 3
    %p135 = por %p133, %p134
    %p136 = scmp.ne.s32.totalorder %s125, %s126
    %p137 = scmp.eq.s32.totalorder %s27, 0
    %p138 = por %p136, %p137
    %p139 = scmp.ne.s32.totalorder %s125, %s126
    %p140 = scmp.eq.s32.totalorder %s28, 3
    %p141 = por %p139, %p140
    %p143 = scmp.ne.s32.totalorder %s126, %s142
    %p144 = scmp.eq.s32.totalorder %s28, 0
    %p145 = por %p143, %p144
    %s146 = ssub.s32 %s30, %s37
    %p147 = scmp.eq.s32.totalorder %s146, 0
    %s149 = sadd.s32 %s148, 1
    %s150 = scalar_select %p147, %s148, %s149
    %p153 = pneg %p147
    %p154 = scmp.eq.s32.totalorder %s22, 3
    %p155 = por %p153, %p154
    %p156 = scmp.ne.s32.totalorder %s148, %s151
    %p157 = scmp.eq.s32.totalorder %s22, 0
    %p158 = por %p156, %p157
    %p159 = scmp.ne.s32.totalorder %s148, %s151
    %p160 = scmp.eq.s32.totalorder %s27, 3
    %p161 = por %p159, %p160
    %p162 = scmp.ne.s32.totalorder %s151, %s152
    %p163 = scmp.eq.s32.totalorder %s27, 0
    %p164 = por %p162, %p163
    %p165 = scmp.ne.s32.totalorder %s151, %s152
    %p166 = scmp.eq.s32.totalorder %s28, 3
    %p167 = por %p165, %p166
    %p169 = scmp.ne.s32.totalorder %s152, %s168
    %p170 = scmp.eq.s32.totalorder %s28, 0
    %p171 = por %p169, %p170
    %s172 = ssub.s32 %s30, %s37
    %p173 = scmp.eq.s32.totalorder %s172, 0
    %s175 = sadd.s32 %s174, 1
    %s176 = scalar_select %p173, %s174, %s175
    %p179 = pneg %p173
    %p180 = scmp.eq.s32.totalorder %s22, 3
    %p181 = por %p179, %p180
    %p182 = scmp.ne.s32.totalorder %s174, %s177
    %p183 = scmp.eq.s32.totalorder %s22, 0
    %p184 = por %p182, %p183
    %p185 = scmp.ne.s32.totalorder %s174, %s177
    %p186 = scmp.eq.s32.totalorder %s27, 3
    %p187 = por %p185, %p186
    %p188 = scmp.ne.s32.totalorder %s177, %s178
    %p189 = scmp.eq.s32.totalorder %s27, 0
    %p190 = por %p188, %p189
    %p191 = scmp.ne.s32.totalorder %s177, %s178
    %p192 = scmp.eq.s32.totalorder %s28, 3
    %p193 = por %p191, %p192
    %p195 = scmp.ne.s32.totalorder %s178, %s194
    %p196 = scmp.eq.s32.totalorder %s28, 0
    %p197 = por %p195, %p196
    %s198 = ssub.s32 %s30, %s37
    %p199 = scmp.eq.s32.totalorder %s198, 0
    %s201 = sadd.s32 %s200, 1
    %s202 = scalar_select %p199, %s200, %s201
    %p205 = pneg %p199
    %p206 = scmp.eq.s32.totalorder %s22, 3
    %p207 = por %p205, %p206
    %p208 = scmp.ne.s32.totalorder %s200, %s203
    %p209 = scmp.eq.s32.totalorder %s22, 0
    %p210 = por %p208, %p209
    %p211 = scmp.ne.s32.totalorder %s200, %s203
    %p212 = scmp.eq.s32.totalorder %s27, 3
    %p213 = por %p211, %p212
    %p214 = scmp.ne.s32.totalorder %s203, %s204
    %p215 = scmp.eq.s32.totalorder %s27, 0
    %p216 = por %p214, %p215
    %p217 = scmp.ne.s32.totalorder %s203, %s204
    %p218 = scmp.eq.s32.totalorder %s28, 3
    %p219 = por %p217, %p218
    %p221 = scmp.ne.s32.totalorder %s204, %s220
    %p222 = scmp.eq.s32.totalorder %s28, 0
    %p223 = por %p221, %p222
    %s224 = ssub.s32 %s30, %s37
    %p225 = scmp.eq.s32.totalorder %s224, 0
    %s227 = sadd.s32 %s226, 1
    %s228 = scalar_select %p225, %s226, %s227
    %p231 = pneg %p225
    %p232 = scmp.eq.s32.totalorder %s22, 3
    %p233 = por %p231, %p232
    %p234 = scmp.ne.s32.totalorder %s226, %s229
    %p235 = scmp.eq.s32.totalorder %s22, 0
    %p236 = por %p234, %p235
    %p237 = scmp.ne.s32.totalorder %s226, %s229
    %p238 = scmp.eq.s32.totalorder %s27, 3
    %p239 = por %p237, %p238
    %p240 = scmp.ne.s32.totalorder %s229, %s230
    %p241 = scmp.eq.s32.totalorder %s27, 0
    %p242 = por %p240, %p241
    %p243 = scmp.ne.s32.totalorder %s229, %s230
    %p244 = scmp.eq.s32.totalorder %s28, 3
    %p245 = por %p243, %p244
    %p247 = scmp.ne.s32.totalorder %s230, %s246
    %p248 = scmp.eq.s32.totalorder %s28, 0
    %p249 = por %p247, %p248
    %s250 = ssub.s32 %s30, %s37
    %p251 = scmp.eq.s32.totalorder %s250, 0
    %s253 = sadd.s32 %s252, 1
    %s254 = scalar_select %p251, %s252, %s253
    %p257 = pneg %p251
    %p258 = scmp.eq.s32.totalorder %s22, 3
    %p259 = por %p257, %p258
    %p260 = scmp.ne.s32.totalorder %s252, %s255
    %p261 = scmp.eq.s32.totalorder %s22, 0
    %p262 = por %p260, %p261
    %p263 = scmp.ne.s32.totalorder %s252, %s255
    %p264 = scmp.eq.s32.totalorder %s27, 3
    %p265 = por %p263, %p264
    %p266 = scmp.ne.s32.totalorder %s255, %s256
    %p267 = scmp.eq.s32.totalorder %s27, 0
    %p268 = por %p266, %p267
    %p269 = scmp.ne.s32.totalorder %s255, %s256
    %p270 = scmp.eq.s32.totalorder %s28, 3
    %p271 = por %p269, %p270
    %p273 = scmp.ne.s32.totalorder %s256, %s272
    %p274 = scmp.eq.s32.totalorder %s28, 0
    %p275 = por %p273, %p274
    %s276 = ssub.s32 %s30, %s37
    %p277 = scmp.eq.s32.totalorder %s276, 0
    %s279 = sadd.s32 %s278, 1
    %s280 = scalar_select %p277, %s278, %s279
    %p283 = pneg %p277
    %p284 = scmp.eq.s32.totalorder %s22, 3
    %p285 = por %p283, %p284
    %p286 = scmp.ne.s32.totalorder %s278, %s281
    %p287 = scmp.eq.s32.totalorder %s22, 0
    %p288 = por %p286, %p287
    %p289 = scmp.ne.s32.totalorder %s278, %s281
    %p290 = scmp.eq.s32.totalorder %s27, 3
    %p291 = por %p289, %p290
    %p292 = scmp.ne.s32.totalorder %s281, %s282
    %p293 = scmp.eq.s32.totalorder %s27, 0
    %p294 = por %p292, %p293
    %p295 = scmp.ne.s32.totalorder %s281, %s282
    %p296 = scmp.eq.s32.totalorder %s28, 3
    %p297 = por %p295, %p296
    %p299 = scmp.ne.s32.totalorder %s282, %s298
    %p300 = scmp.eq.s32.totalorder %s28, 0
    %p301 = por %p299, %p300
    %s302 = ssub.s32 %s30, %s37
    %p303 = scmp.eq.s32.totalorder %s302, 0
    %s305 = sadd.s32 %s304, 1
    %s306 = scalar_select %p303, %s304, %s305
    %p309 = pneg %p303
    %p310 = scmp.eq.s32.totalorder %s22, 3
    %p311 = por %p309, %p310
    %p312 = scmp.ne.s32.totalorder %s304, %s307
    %p313 = scmp.eq.s32.totalorder %s22, 0
    %p314 = por %p312, %p313
    %p315 = scmp.ne.s32.totalorder %s304, %s307
    %p316 = scmp.eq.s32.totalorder %s27, 3
    %p317 = por %p315, %p316
    %p318 = scmp.ne.s32.totalorder %s307, %s308
    %p319 = scmp.eq.s32.totalorder %s27, 0
    %p320 = por %p318, %p319
    %p321 = scmp.ne.s32.totalorder %s307, %s308
    %p322 = scmp.eq.s32.totalorder %s28, 3
    %p323 = por %p321, %p322
    %p325 = scmp.ne.s32.totalorder %s308, %s324
    %p326 = scmp.eq.s32.totalorder %s28, 0
    %p327 = por %p325, %p326
    %s328 = ssub.s32 %s30, %s37
    %p329 = scmp.eq.s32.totalorder %s328, 0
    %s331 = sadd.s32 %s330, 1
    %s332 = scalar_select %p329, %s330, %s331
    %p335 = pneg %p329
    %p336 = scmp.eq.s32.totalorder %s22, 3
    %p337 = por %p335, %p336
    %p338 = scmp.ne.s32.totalorder %s330, %s333
    %p339 = scmp.eq.s32.totalorder %s22, 0
    %p340 = por %p338, %p339
    %p341 = scmp.ne.s32.totalorder %s330, %s333
    %p342 = scmp.eq.s32.totalorder %s27, 3
    %p343 = por %p341, %p342
    %p344 = scmp.ne.s32.totalorder %s333, %s334
    %p345 = scmp.eq.s32.totalorder %s27, 0
    %p346 = por %p344, %p345
    %p347 = scmp.ne.s32.totalorder %s333, %s334
    %p348 = scmp.eq.s32.totalorder %s28, 3
    %p349 = por %p347, %p348
    %p351 = scmp.ne.s32.totalorder %s334, %s350
    %p352 = scmp.eq.s32.totalorder %s28, 0
    %p353 = por %p351, %p352
    %s354 = ssub.s32 %s30, %s37
    %p355 = scmp.eq.s32.totalorder %s354, 0
    %s357 = sadd.s32 %s356, 1
    %s358 = scalar_select %p355, %s356, %s357
    %p361 = pneg %p355
    %p362 = scmp.eq.s32.totalorder %s22, 3
    %p363 = por %p361, %p362
    %p364 = scmp.ne.s32.totalorder %s356, %s359
    %p365 = scmp.eq.s32.totalorder %s22, 0
    %p366 = por %p364, %p365
    %p367 = scmp.ne.s32.totalorder %s356, %s359
    %p368 = scmp.eq.s32.totalorder %s27, 3
    %p369 = por %p367, %p368
    %p370 = scmp.ne.s32.totalorder %s359, %s360
    %p371 = scmp.eq.s32.totalorder %s27, 0
    %p372 = por %p370, %p371
    %p373 = scmp.ne.s32.totalorder %s359, %s360
    %p374 = scmp.eq.s32.totalorder %s28, 3
    %p375 = por %p373, %p374
    %p377 = scmp.ne.s32.totalorder %s360, %s376
    %p378 = scmp.eq.s32.totalorder %s28, 0
    %p379 = por %p377, %p378
    %s381 = sadd.s32 %s380, 1
    %p384 = scmp.eq.s32.totalorder %s22, 3
    %p385 = scmp.ne.s32.totalorder %s380, %s382
    %p386 = scmp.eq.s32.totalorder %s22, 0
    %p387 = por %p385, %p386
    %p388 = scmp.ne.s32.totalorder %s380, %s382
    %p389 = scmp.eq.s32.totalorder %s27, 3
    %p390 = por %p388, %p389
    %p391 = scmp.ne.s32.totalorder %s382, %s383
    %p392 = scmp.eq.s32.totalorder %s27, 0
    %p393 = por %p391, %p392
    %p394 = scmp.ne.s32.totalorder %s382, %s383
    %p395 = scmp.eq.s32.totalorder %s28, 3
    %p396 = por %p394, %p395
    %p398 = scmp.ne.s32.totalorder %s383, %s397
    %p399 = scmp.eq.s32.totalorder %s28, 0
    %p400 = por %p398, %p399
    %s402 = sadd.s32 %s401, 1
    %p405 = scmp.eq.s32.totalorder %s22, 3
    %p406 = scmp.ne.s32.totalorder %s401, %s403
    %p407 = scmp.eq.s32.totalorder %s22, 0
    %p408 = por %p406, %p407
    %p409 = scmp.ne.s32.totalorder %s401, %s403
    %p410 = scmp.eq.s32.totalorder %s27, 3
    %p411 = por %p409, %p410
    %p412 = scmp.ne.s32.totalorder %s403, %s404
    %p413 = scmp.eq.s32.totalorder %s27, 0
    %p414 = por %p412, %p413
    %p415 = scmp.ne.s32.totalorder %s403, %s404
    %p416 = scmp.eq.s32.totalorder %s28, 3
    %p417 = por %p415, %p416
    %p419 = scmp.ne.s32.totalorder %s404, %s418
    %p420 = scmp.eq.s32.totalorder %s28, 0
    %p421 = por %p419, %p420
    %s423 = sadd.s32 %s422, 1
    %p426 = scmp.eq.s32.totalorder %s22, 3
    %p427 = scmp.ne.s32.totalorder %s422, %s424
    %p428 = scmp.eq.s32.totalorder %s22, 0
    %p429 = por %p427, %p428
    %p430 = scmp.ne.s32.totalorder %s422, %s424
    %p431 = scmp.eq.s32.totalorder %s27, 3
    %p432 = por %p430, %p431
    %p433 = scmp.ne.s32.totalorder %s424, %s425
    %p434 = scmp.eq.s32.totalorder %s27, 0
    %p435 = por %p433, %p434
    %p436 = scmp.ne.s32.totalorder %s424, %s425
    %p437 = scmp.eq.s32.totalorder %s28, 3
    %p438 = por %p436, %p437
    %p440 = scmp.ne.s32.totalorder %s425, %s439
    %p441 = scmp.eq.s32.totalorder %s28, 0
    %p442 = por %p440, %p441
    %s443 = ssub.s32 %s30, %s37
    %s444 = ssub.s32 %s29, %s41
    %s445 = sor.u32 %s443, %s444
    %p446 = scmp.eq.s32.totalorder %s445, 0
    %s448 = sadd.s32 %s447, 1
    %s449 = scalar_select %p446, %s447, %s448
    %p452 = pneg %p446
    %p453 = scmp.eq.s32.totalorder %s22, 3
    %p454 = por %p452, %p453
    %p455 = scmp.ne.s32.totalorder %s447, %s450
    %p456 = scmp.eq.s32.totalorder %s22, 0
    %p457 = por %p455, %p456
    %p458 = scmp.ne.s32.totalorder %s447, %s450
    %p459 = scmp.eq.s32.totalorder %s27, 3
    %p460 = por %p458, %p459
    %p461 = scmp.ne.s32.totalorder %s450, %s451
    %p462 = scmp.eq.s32.totalorder %s27, 0
    %p463 = por %p461, %p462
    %p464 = scmp.ne.s32.totalorder %s450, %s451
    %p465 = scmp.eq.s32.totalorder %s28, 3
    %p466 = por %p464, %p465
    %p468 = scmp.ne.s32.totalorder %s451, %s467
    %p469 = scmp.eq.s32.totalorder %s28, 0
    %p470 = por %p468, %p469
    %p471 = scmp.le.s32.totalorder 1, %s22
    %p472 = scmp.lt.s32.totalorder %s22, 5
    %p473 = pnand %p471, %p472
    %p474 = pneg %p473
    // Predicated region
    $region9: #{text_encoder_forward.1} parent=5 // pred_check
      _
    $region10: #{text_encoder_forward.1} parent=5 // pred_check_branch
      %476 = sbr.rel (%p473) target = $region12
    $region11: #{text_encoder_forward.1} parent=5 // pred_region
      %s477 = ssub.s32 %s22, 1
      // Predicated region
      $region13: #{text_encoder_forward.1} parent=11 // pred_check
        %p478 = pneg %p393
      $region14: #{text_encoder_forward.1} parent=11 // pred_check_branch
        %480 = sbr.rel (%p478) target = $region16
      $region15: #{text_encoder_forward.1} parent=11 // pred_region
        _
      $region16: #{text_encoder_forward.1} parent=11 // pred_fallthru
        _
      // Predicated region
      $region17: #{text_encoder_forward.1} parent=11 // pred_check
        %p481 = pneg %p414
      $region18: #{text_encoder_forward.1} parent=11 // pred_check_branch
        %483 = sbr.rel (%p481) target = $region20
      $region19: #{text_encoder_forward.1} parent=11 // pred_region
        _
      $region20: #{text_encoder_forward.1} parent=11 // pred_fallthru
        _
      // Predicated region
      $region21: #{text_encoder_forward.1} parent=11 // pred_check
        %p484 = pneg %p435
      $region22: #{text_encoder_forward.1} parent=11 // pred_check_branch
        %486 = sbr.rel (%p484) target = $region24
      $region23: #{text_encoder_forward.1} parent=11 // pred_region
        _
      $region24: #{text_encoder_forward.1} parent=11 // pred_fallthru
        _
    $region12: #{text_encoder_forward.1} parent=5 // pred_fallthru
      _
    %p487 = scmp.lt.s32.totalorder %s22, 4
    // Predicated region
    $region25: #{text_encoder_forward.1} parent=5 // pred_check
      %p488 = pneg %p487
    $region26: #{text_encoder_forward.1} parent=5 // pred_check_branch
      %490 = sbr.rel (%p488) target = $region28
    $region27: #{text_encoder_forward.1} parent=5 // pred_region
      // Predicated region
      $region29: #{text_encoder_forward.1} parent=27 // pred_check
        %p491 = pneg %p54
      $region30: #{text_encoder_forward.1} parent=27 // pred_check_branch
        %493 = sbr.rel (%p491) target = $region32
      $region31: #{text_encoder_forward.1} parent=27 // pred_region
        %p494 = scmp.lt.s32.totalorder %s29, 1
        %s495 = scalar_select %p494, %s29, 1
        %s496 = smul.addr %s495, 2
        %s497 = smul.addr %s496, 8
        %s498 = scalar_lea.vmem %s0, %s497
      $region32: #{text_encoder_forward.1} parent=27 // pred_fallthru
        _
      // Predicated region
      $region33: #{text_encoder_forward.1} parent=27 // pred_check
        %p499 = pneg %p80
      $region34: #{text_encoder_forward.1} parent=27 // pred_check_branch
        %501 = sbr.rel (%p499) target = $region36
      $region35: #{text_encoder_forward.1} parent=27 // pred_region
        %p502 = scmp.lt.s32.totalorder %s30, 1
        %s503 = scalar_select %p502, %s30, 1
        %s504 = scalar_lea.vmem %s1, %s503
      $region36: #{text_encoder_forward.1} parent=27 // pred_fallthru
        _
      // Predicated region
      $region37: #{text_encoder_forward.1} parent=27 // pred_check
        %p505 = pneg %p106
      $region38: #{text_encoder_forward.1} parent=27 // pred_check_branch
        %507 = sbr.rel (%p505) target = $region40
      $region39: #{text_encoder_forward.1} parent=27 // pred_region
        %p508 = scmp.lt.s32.totalorder %s30, 1
        %s509 = scalar_select %p508, %s30, 1
        %s510 = scalar_lea.vmem %s2, %s509
      $region40: #{text_encoder_forward.1} parent=27 // pred_fallthru
        _
      // Predicated region
      $region41: #{text_encoder_forward.1} parent=27 // pred_check
        %p511 = pneg %p132
      $region42: #{text_encoder_forward.1} parent=27 // pred_check_branch
        %513 = sbr.rel (%p511) target = $region44
      $region43: #{text_encoder_forward.1} parent=27 // pred_region
        %p514 = scmp.lt.s32.totalorder %s30, 1
        %s515 = scalar_select %p514, %s30, 1
        %s516 = smul.addr %s515, 4
        %s517 = smul.addr %s516, 4
        %s518 = scalar_lea.vmem %s3, %s517
      $region44: #{text_encoder_forward.1} parent=27 // pred_fallthru
        _
      // Predicated region
      $region45: #{text_encoder_forward.1} parent=27 // pred_check
        %p519 = pneg %p158
      $region46: #{text_encoder_forward.1} parent=27 // pred_check_branch
        %521 = sbr.rel (%p519) target = $region48
      $region47: #{text_encoder_forward.1} parent=27 // pred_region
        %p522 = scmp.lt.s32.totalorder %s30, 1
        %s523 = scalar_select %p522, %s30, 1
        %s524 = scalar_lea.vmem %s4, %s523
      $region48: #{text_encoder_forward.1} parent=27 // pred_fallthru
        _
      // Predicated region
      $region49: #{text_encoder_forward.1} parent=27 // pred_check
        %p525 = pneg %p184
      $region50: #{text_encoder_forward.1} parent=27 // pred_check_branch
        %527 = sbr.rel (%p525) target = $region52
      $region51: #{text_encoder_forward.1} parent=27 // pred_region
        %p528 = scmp.lt.s32.totalorder %s30, 1
        %s529 = scalar_select %p528, %s30, 1
        %s530 = smul.addr %s529, 4
        %s531 = smul.addr %s530, 4
        %s532 = scalar_lea.vmem %s5, %s531
      $region52: #{text_encoder_forward.1} parent=27 // pred_fallthru
        _
      // Predicated region
      $region53: #{text_encoder_forward.1} parent=27 // pred_check
        %p533 = pneg %p210
      $region54: #{text_encoder_forward.1} parent=27 // pred_check_branch
        %535 = sbr.rel (%p533) target = $region56
      $region55: #{text_encoder_forward.1} parent=27 // pred_region
        %p536 = scmp.lt.s32.totalorder %s30, 1
        %s537 = scalar_select %p536, %s30, 1
        %s538 = scalar_lea.vmem %s6, %s537
      $region56: #{text_encoder_forward.1} parent=27 // pred_fallthru
        _
      // Predicated region
      $region57: #{text_encoder_forward.1} parent=27 // pred_check
        %p539 = pneg %p236
      $region58: #{text_encoder_forward.1} parent=27 // pred_check_branch
        %541 = sbr.rel (%p539) target = $region60
      $region59: #{text_encoder_forward.1} parent=27 // pred_region
        %p542 = scmp.lt.s32.totalorder %s30, 1
        %s543 = scalar_select %p542, %s30, 1
        %s544 = scalar_lea.vmem %s7, %s543
      $region60: #{text_encoder_forward.1} parent=27 // pred_fallthru
        _
      // Predicated region
      $region61: #{text_encoder_forward.1} parent=27 // pred_check
        %p545 = pneg %p262
      $region62: #{text_encoder_forward.1} parent=27 // pred_check_branch
        %547 = sbr.rel (%p545) target = $region64
      $region63: #{text_encoder_forward.1} parent=27 // pred_region
        %p548 = scmp.lt.s32.totalorder %s30, 1
        %s549 = scalar_select %p548, %s30, 1
        %s550 = scalar_lea.vmem %s8, %s549
      $region64: #{text_encoder_forward.1} parent=27 // pred_fallthru
        _
      // Predicated region
      $region65: #{text_encoder_forward.1} parent=27 // pred_check
        %p551 = pneg %p288
      $region66: #{text_encoder_forward.1} parent=27 // pred_check_branch
        %553 = sbr.rel (%p551) target = $region68
      $region67: #{text_encoder_forward.1} parent=27 // pred_region
        %p554 = scmp.lt.s32.totalorder %s30, 1
        %s555 = scalar_select %p554, %s30, 1
        %s556 = smul.addr %s555, 4
        %s557 = smul.addr %s556, 4
        %s558 = scalar_lea.vmem %s9, %s557
      $region68: #{text_encoder_forward.1} parent=27 // pred_fallthru
        _
      // Predicated region
      $region69: #{text_encoder_forward.1} parent=27 // pred_check
        %p559 = pneg %p314
      $region70: #{text_encoder_forward.1} parent=27 // pred_check_branch
        %561 = sbr.rel (%p559) target = $region72
      $region71: #{text_encoder_forward.1} parent=27 // pred_region
        %p562 = scmp.lt.s32.totalorder %s30, 1
        %s563 = scalar_select %p562, %s30, 1
        %s564 = scalar_lea.vmem %s10, %s563
      $region72: #{text_encoder_forward.1} parent=27 // pred_fallthru
        _
      // Predicated region
      $region73: #{text_encoder_forward.1} parent=27 // pred_check
        %p565 = pneg %p340
      $region74: #{text_encoder_forward.1} parent=27 // pred_check_branch
        %567 = sbr.rel (%p565) target = $region76
      $region75: #{text_encoder_forward.1} parent=27 // pred_region
        %p568 = scmp.lt.s32.totalorder %s30, 1
        %s569 = scalar_select %p568, %s30, 1
        %s570 = smul.addr %s569, 16
        %s571 = smul.addr %s570, 4
        %s572 = scalar_lea.vmem %s11, %s571
      $region76: #{text_encoder_forward.1} parent=27 // pred_fallthru
        _
      // Predicated region
      $region77: #{text_encoder_forward.1} parent=27 // pred_check
        %p573 = pneg %p366
      $region78: #{text_encoder_forward.1} parent=27 // pred_check_branch
        %575 = sbr.rel (%p573) target = $region80
      $region79: #{text_encoder_forward.1} parent=27 // pred_region
        %p576 = scmp.lt.s32.totalorder %s30, 1
        %s577 = scalar_select %p576, %s30, 1
        %s578 = scalar_lea.vmem %s12, %s577
      $region80: #{text_encoder_forward.1} parent=27 // pred_fallthru
        _
    $region28: #{text_encoder_forward.1} parent=5 // pred_fallthru
      _
    %p579 = scmp.le.s32.totalorder 1, %s22
    %p580 = scmp.lt.s32.totalorder %s22, 5
    %p581 = pnand %p579, %p580
    %p582 = pneg %p581
    // Predicated region
    $region81: #{text_encoder_forward.1} parent=5 // pred_check
      _
    $region82: #{text_encoder_forward.1} parent=5 // pred_check_branch
      %584 = sbr.rel (%p581) target = $region84
    $region83: #{text_encoder_forward.1} parent=5 // pred_region
      %s585 = ssub.s32 %s22, 1
      %p586 = scmp.lt.s32.totalorder %s31, 1
      %s587 = scalar_select %p586, %s31, 1
      %s588 = smul.addr %s587, 2
      %s589 = smul.addr %s588, 8
      %s590 = scalar_lea.vmem %s0, %s589
      %p591 = pneg %p60
      %p592 = pneg %p57
      %p593 = scmp.lt.s32.totalorder %s32, 1
      %s594 = scalar_select %p593, %s32, 1
      %s595 = scalar_lea.vmem %s1, %s594
      %p596 = pneg %p86
      %p597 = pneg %p83
      %p598 = scmp.lt.s32.totalorder %s32, 1
      %s599 = scalar_select %p598, %s32, 1
      %s600 = scalar_lea.vmem %s2, %s599
      %p601 = pneg %p112
      %p602 = pneg %p109
      %p603 = scmp.lt.s32.totalorder %s32, 1
      %s604 = scalar_select %p603, %s32, 1
      %s605 = smul.addr %s604, 4
      %s606 = smul.addr %s605, 4
      %s607 = scalar_lea.vmem %s3, %s606
      %p608 = pneg %p138
      %p609 = pneg %p135
      %p610 = scmp.lt.s32.totalorder %s32, 1
      %s611 = scalar_select %p610, %s32, 1
      %s612 = scalar_lea.vmem %s4, %s611
      %p613 = pneg %p164
      %p614 = pneg %p161
      %p615 = scmp.lt.s32.totalorder %s32, 1
      %s616 = scalar_select %p615, %s32, 1
      %s617 = smul.addr %s616, 4
      %s618 = smul.addr %s617, 4
      %s619 = scalar_lea.vmem %s5, %s618
      %p620 = pneg %p190
      %p621 = pneg %p187
      %p622 = scmp.lt.s32.totalorder %s32, 1
      %s623 = scalar_select %p622, %s32, 1
      %s624 = scalar_lea.vmem %s6, %s623
      %p625 = pneg %p216
      %p626 = pneg %p213
      %p627 = scmp.lt.s32.totalorder %s32, 1
      %s628 = scalar_select %p627, %s32, 1
      %s629 = scalar_lea.vmem %s7, %s628
      %p630 = pneg %p242
      %p631 = pneg %p239
      %p632 = scmp.lt.s32.totalorder %s32, 1
      %s633 = scalar_select %p632, %s32, 1
      %s634 = scalar_lea.vmem %s8, %s633
      %p635 = pneg %p268
      %p636 = pneg %p265
      %p637 = scmp.lt.s32.totalorder %s32, 1
      %s638 = scalar_select %p637, %s32, 1
      %s639 = smul.addr %s638, 4
      %s640 = smul.addr %s639, 4
      %s641 = scalar_lea.vmem %s9, %s640
      %p642 = pneg %p294
      %p643 = pneg %p291
      %p644 = scmp.lt.s32.totalorder %s32, 1
      %s645 = scalar_select %p644, %s32, 1
      %s646 = scalar_lea.vmem %s10, %s645
      %p647 = pneg %p320
      %p648 = pneg %p317
      %p649 = scmp.lt.s32.totalorder %s32, 1
      %s650 = scalar_select %p649, %s32, 1
      %s651 = smul.addr %s650, 16
      %s652 = smul.addr %s651, 4
      %s653 = scalar_lea.vmem %s11, %s652
      %p654 = pneg %p346
      %p655 = pneg %p343
      %p656 = scmp.lt.s32.totalorder %s32, 1
      %s657 = scalar_select %p656, %s32, 1
      %s658 = scalar_lea.vmem %s12, %s657
      %p659 = pneg %p372
      %p660 = pneg %p369
      %p661 = pneg %p393
      %p662 = pneg %p390
      %p663 = pneg %p414
      %p664 = pneg %p411
      %p665 = pneg %p435
      %p666 = pneg %p432
      %p667 = pneg %p463
      %p668 = pneg %p460
      %p669 = scmp.lt.s32.totalorder %s32, 1
      %s670 = scalar_select %p669, %s32, 1
      %p671 = scmp.lt.s32.totalorder %s31, 1
      %s672 = scalar_select %p671, %s31, 1
      %s673 = smul.addr %s672, 2
      %s674 = smul.addr %s670, 4
      %s675 = sadd.s32 %s673, %s674
      %s676 = smul.addr %s675, 8
      %s677 = scalar_lea.vmem %s16, %s676
      %p678 = scmp.lt.s32.totalorder %s31, 1
      %s679 = scalar_select %p678, %s31, 1
      %s680 = smul.addr %s679, 2
      %s681 = smul.addr %s680, 8
      %s682 = scalar_lea.vmem %s0, %s681
      %p683 = scmp.lt.s32.totalorder %s32, 1
      %s684 = scalar_select %p683, %s32, 1
      %s685 = scalar_lea.vmem %s1, %s684
      %p686 = scmp.lt.s32.totalorder %s32, 1
      %s687 = scalar_select %p686, %s32, 1
      %s688 = scalar_lea.vmem %s2, %s687
      %p689 = scmp.lt.s32.totalorder %s32, 1
      %s690 = scalar_select %p689, %s32, 1
      %s691 = smul.addr %s690, 4
      %s692 = smul.addr %s691, 4
      %s693 = scalar_lea.vmem %s3, %s692
      %p694 = scmp.lt.s32.totalorder %s32, 1
      %s695 = scalar_select %p694, %s32, 1
      %s696 = scalar_lea.vmem %s4, %s695
      %p697 = scmp.lt.s32.totalorder %s32, 1
      %s698 = scalar_select %p697, %s32, 1
      %s699 = smul.addr %s698, 4
      %s700 = smul.addr %s699, 4
      %s701 = scalar_lea.vmem %s5, %s700
      %p702 = scmp.lt.s32.totalorder %s32, 1
      %s703 = scalar_select %p702, %s32, 1
      %s704 = scalar_lea.vmem %s6, %s703
      %p705 = scmp.lt.s32.totalorder %s32, 1
      %s706 = scalar_select %p705, %s32, 1
      %s707 = scalar_lea.vmem %s7, %s706
      %p708 = scmp.lt.s32.totalorder %s32, 1
      %s709 = scalar_select %p708, %s32, 1
      %s710 = scalar_lea.vmem %s8, %s709
      %p711 = scmp.lt.s32.totalorder %s32, 1
      %s712 = scalar_select %p711, %s32, 1
      %s713 = smul.addr %s712, 4
      %s714 = smul.addr %s713, 4
      %s715 = scalar_lea.vmem %s9, %s714
      %p716 = scmp.lt.s32.totalorder %s32, 1
      %s717 = scalar_select %p716, %s32, 1
      %s718 = scalar_lea.vmem %s10, %s717
      %p719 = scmp.lt.s32.totalorder %s32, 1
      %s720 = scalar_select %p719, %s32, 1
      %s721 = smul.addr %s720, 16
      %s722 = smul.addr %s721, 4
      %s723 = scalar_lea.vmem %s11, %s722
      %p724 = scmp.lt.s32.totalorder %s32, 1
      %s725 = scalar_select %p724, %s32, 1
      %s726 = scalar_lea.vmem %s12, %s725
      %p727 = scmp.lt.s32.totalorder %s32, 1
      %s728 = scalar_select %p727, %s32, 1
      %p729 = scmp.lt.s32.totalorder %s31, 1
      %s730 = scalar_select %p729, %s31, 1
      %s731 = smul.addr %s730, 2
      %s732 = smul.addr %s728, 4
      %s733 = sadd.s32 %s731, %s732
      %s734 = smul.addr %s733, 8
      %s735 = scalar_lea.vmem %s16, %s734
      %p739 = scmp.eq.s32.totalorder %s32, 0
      // Predicated region
      $region85: #{text_encoder_forward.1} parent=83 // pred_check
        %p740 = pneg %p739
      $region86: #{text_encoder_forward.1} parent=83 // pred_check_branch
        %742 = sbr.rel (%p740) target = $region88
      $region87: #{text_encoder_forward.1} parent=83 // pred_region
        %v743 = vld [vmem:[%s682] sm:$0xff]
        %v744 = vld [vmem:[%s682 + $0x8] sm:$0xff]
        %vm745 = vcmask 261120
        %746 = vst.msk [vmem:[#allocation2] sm:$0xff] %vm745, %v743
        %747 = vst.msk [vmem:[#allocation2 + $0x8] sm:$0xff] %vm745, %v744
      $region88: #{text_encoder_forward.1} parent=83 // pred_fallthru
        _
      %v748 = vld [vmem:[#allocation2] sm:$0xff]
      %v749 = vld [vmem:[#allocation2 + $0x8] sm:$0xff]
      %v750 = vld [vmem:[%s685] sm:$0x1]
      %v751 = vld [vmem:[%s688] sm:$0x1]
      %vm752 = vcmask 261120
      %v753 = vsel %vm752, %v748, 0.0
      %754 = vadd.xlane.f32.xlu0 %v753
      %v755 = vpop.xlane.xlu0 %754
      %v756 = vsel %vm752, %v749, 0.0
      %757 = vadd.xlane.f32.xlu0 %v756
      %v758 = vpop.xlane.xlu0 %757
      %v759 = vrcp.pop 32.0
      %v760 = vmul.f32 %v755, %v759
      %v761 = vmul.f32 %v758, %v759
      %v762 = vsub.f32 %v748, %v760
      %v763 = vsub.f32 %v749, %v761
      %v764 = vmul.f32 %v762, %v762
      %v765 = vmul.f32 %v763, %v763
      %v766 = vsel %vm752, %v764, 0.0
      %767 = vadd.xlane.f32.xlu0 %v766
      %v768 = vpop.xlane.xlu0 %767
      %v769 = vsel %vm752, %v765, 0.0
      %770 = vadd.xlane.f32.xlu0 %v769
      %v771 = vpop.xlane.xlu0 %770
      %v772 = vmul.f32 %v768, %v759
      %v773 = vmul.f32 %v771, %v759
      %v774 = vadd.f32 %v772, 1e-05
      %v775 = vadd.f32 %v773, 1e-05
      %v776 = vrsqrt.pop %v774
      %v777 = vrsqrt.pop %v775
      %v778 = vmul.f32 %v762, %v776
      %v779 = vmul.f32 %v763, %v777
      %v781 = vlaneseq
      %v782 = vshrl.u32 %v781, 7
      %v783 = vsub.s32 0, %v782
      %v784 = vrot.slane %v750, %v783
      %v786 = vmul.f32 %v778, %v784
      %v787 = vmul.f32 %v779, %v784
      %v789 = vlaneseq
      %v790 = vshrl.u32 %v789, 7
      %v791 = vsub.s32 0, %v790
      %v792 = vrot.slane %v751, %v791
      %v794 = vadd.f32 %v786, %v792
      %v795 = vadd.f32 %v787, %v792
      %v796 = vpack.c.bf16 %v795, %v794
      %v797 = vld [vmem:[%s693] sm:$0xf]
      %v798 = vld [vmem:[%s693 + $0x4] sm:$0xf]
      %v799 = vld [vmem:[%s693 + $0x8] sm:$0xf]
      %v800 = vld [vmem:[%s693 + $0xc] sm:$0xf]
      %v801 = vld [vmem:[%s696] sm:$0x1]
      %v803 = vlaneseq
      %v804 = vshrl.u32 %v803, 7
      %v805 = vsub.s32 0, %v804
      %v806 = vrot.slane %v801, %v805
      %v812 = vunpack.c.l.b16 %v797
      %v813 = vunpack.c.l.b16 %v798
      %v814 = vunpack.c.l.b16 %v799
      %v815 = vunpack.c.l.b16 %v800
      %v816 = vpack.c.b16 %v813, %v812
      %v817 = vpack.c.b16 %v815, %v814
      %v821 = vsel %vm752, %v796, 0
      %823 = vmatprep.subr.bf16.mxu0 0
      %824 = vmatpush1.bf16.msra.mxu0 %v816
      %825 = vmatprep.subr.bf16.mxu0 0
      %826 = vmatpush1.bf16.msra.mxu0 %v817
      %827 = vmatprep.subr.bf16.mxu0 0
      %828 = vmatpush1.bf16.msra.mxu0 0
      %829 = vmatprep.subr.bf16.mxu0 0
      %830 = vmatpush1.bf16.msra.mxu0 0
      %831 = vmatprep.subr.bf16.mxu0 0
      %832 = vmatpush1.bf16.msra.mxu0 0
      %833 = vmatprep.subr.bf16.mxu0 0
      %834 = vmatpush1.bf16.msra.mxu0 0
      %835 = vmatprep.subr.bf16.mxu0 0
      %836 = vmatpush1.bf16.msra.mxu0 0
      %837 = vmatprep.subr.bf16.mxu0 0
      %838 = vmatpush1.bf16.msra.mxu0 0
      %839 = vmatprep.subr.bf16.mxu0 0
      %840 = vmatpush1.bf16.msra.mxu0 0
      %841 = vmatprep.subr.bf16.mxu0 0
      %842 = vmatpush1.bf16.msra.mxu0 0
      %843 = vmatprep.subr.bf16.mxu0 0
      %844 = vmatpush1.bf16.msra.mxu0 0
      %845 = vmatprep.subr.bf16.mxu0 0
      %846 = vmatpush1.bf16.msra.mxu0 0
      %847 = vmatprep.subr.bf16.mxu0 0
      %848 = vmatpush1.bf16.msra.mxu0 0
      %849 = vmatprep.subr.bf16.mxu0 0
      %850 = vmatpush1.bf16.msra.mxu0 0
      %851 = vmatprep.subr.bf16.mxu0 0
      %852 = vmatpush1.bf16.msra.mxu0 0
      %853 = vmatprep.subr.bf16.mxu0 0
      %854 = vmatpush1.bf16.msra.mxu0 0
      %855 = vmatprep.mubr.bf16.mxu0 0
      %856 = vmatmul.mubr.bf16.gmra.mrb[0].mxu0 %v821
      %v857 = vpop.f32.mrb[0].mxu0
      %v858 = vadd.f32 %v806, %v857
      %v859 = vpop.f32.mrb[0].mxu0
      %v860 = vpop.f32.mrb[0].mxu0
      %v861 = vadd.f32 %v806, %v860
      %v862 = vpop.f32.mrb[0].mxu0
      %863 = vdwg.mxu0
      %v864 = vlaneseq
      %v865 = vshrl.u32 %v864, 7
      %v866 = vadd.s32 %v865, 8
      %v867 = vlaneseq
      %v868 = vand.u32 %v867, 127
      %vm869 = vcmp.le.s32.totalorder %v868, %v865
      %vm870 = vcmp.le.s32.totalorder %v868, %v866
      %v871 = vsel %vm869, 0.0, -1e+30
      %v872 = vsel %vm870, 0.0, -1e+30
      %v873 = vpack.c.bf16 %v861, %v858
      %875 = vrot.lane.b32.xlu0 %v873, 96
      %v876 = vpop.permute.xlu0 %875
      %vm877 = vcmask 64512
      %v879 = vsel %vm877, %v873, 0
      %v882 = vsel %vm877, %v876, 0
      %884 = vmatprep.subr.bf16.mxu0 0
      %885 = vmatpush1.bf16.xpose.msra.mxu0 %v882
      %886 = vmatprep.subr.bf16.mxu0 0
      %887 = vmatpush1.bf16.xpose.msra.mxu0 0
      %888 = vmatprep.subr.bf16.mxu0 0
      %889 = vmatpush1.bf16.xpose.msra.mxu0 0
      %890 = vmatprep.subr.bf16.mxu0 0
      %891 = vmatpush1.bf16.xpose.msra.mxu0 0
      %892 = vmatprep.subr.bf16.mxu0 0
      %893 = vmatpush1.bf16.xpose.msra.mxu0 0
      %894 = vmatprep.subr.bf16.mxu0 0
      %895 = vmatpush1.bf16.xpose.msra.mxu0 0
      %896 = vmatprep.subr.bf16.mxu0 0
      %897 = vmatpush1.bf16.xpose.msra.mxu0 0
      %898 = vmatprep.subr.bf16.mxu0 0
      %899 = vmatpush1.bf16.xpose.msra.mxu0 0
      %900 = vmatprep.subr.bf16.mxu0 0
      %901 = vmatpush1.bf16.xpose.msra.mxu0 0
      %902 = vmatprep.subr.bf16.mxu0 0
      %903 = vmatpush1.bf16.xpose.msra.mxu0 0
      %904 = vmatprep.subr.bf16.mxu0 0
      %905 = vmatpush1.bf16.xpose.msra.mxu0 0
      %906 = vmatprep.subr.bf16.mxu0 0
      %907 = vmatpush1.bf16.xpose.msra.mxu0 0
      %908 = vmatprep.subr.bf16.mxu0 0
      %909 = vmatpush1.bf16.xpose.msra.mxu0 0
      %910 = vmatprep.subr.bf16.mxu0 0
      %911 = vmatpush1.bf16.xpose.msra.mxu0 0
      %912 = vmatprep.subr.bf16.mxu0 0
      %913 = vmatpush1.bf16.xpose.msra.mxu0 0
      %914 = vmatprep.subr.bf16.mxu0 0
      %915 = vmatpush1.bf16.xpose.msra.mxu0 0
      %916 = vmatprep.mubr.bf16.mxu0 0
      %917 = vmatmul.mubr.bf16.gmra.mrb[0].mxu0 %v879
      %v918 = vpop.f32.mrb[0].mxu0
      %v919 = vadd.f32 %v871, %v918
      %v920 = vpop.f32.mrb[0].mxu0
      %v921 = vpop.f32.mrb[0].mxu0
      %v922 = vadd.f32 %v872, %v921
      %v923 = vpop.f32.mrb[0].mxu0
      %924 = vdwg.mxu0
      %vm925 = vcmask 130048
      %v926 = vsel %vm925, %v919, -inf
      %927 = vmax.xlane.f32.xlu0 %v926
      %v928 = vpop.xlane.xlu0 %927
      %v929 = vsel %vm925, %v922, -inf
      %930 = vmax.xlane.f32.xlu0 %v929
      %v931 = vpop.xlane.xlu0 %930
      %v932 = vsub.f32 %v919, %v928
      %v933 = vsub.f32 %v922, %v931
      %v934 = vmul.f32 %v932, 1.442695
      %v935 = vpow.pop %v934
      %v936 = vmul.f32 %v933, 1.442695
      %v937 = vpow.pop %v936
      %v938 = vsel %vm925, %v935, 0.0
      %939 = vadd.xlane.f32.xlu0 %v938
      %v940 = vpop.xlane.xlu0 %939
      %v941 = vsel %vm925, %v937, 0.0
      %942 = vadd.xlane.f32.xlu0 %v941
      %v943 = vpop.xlane.xlu0 %942
      %v944 = vrcp.pop %v940
      %v945 = vrcp.pop %v943
      %v946 = vmul.f32 %v935, %v944
      %v947 = vmul.f32 %v937, %v945
      %v948 = vpack.c.bf16 %v947, %v946
      %949 = vrot.lane.b32.xlu0 %v873, 64
      %v950 = vpop.permute.xlu0 %949
      %v953 = vsel %vm925, %v948, 0
      %955 = vmatprep.subr.bf16.mxu0 0
      %956 = vmatpush1.bf16.msra.mxu0 %v950
      %957 = vmatprep.subr.bf16.mxu0 0
      %958 = vmatpush1.bf16.msra.mxu0 0
      %959 = vmatprep.subr.bf16.mxu0 0
      %960 = vmatpush1.bf16.msra.mxu0 0
      %961 = vmatprep.subr.bf16.mxu0 0
      %962 = vmatpush1.bf16.msra.mxu0 0
      %963 = vmatprep.subr.bf16.mxu0 0
      %964 = vmatpush1.bf16.msra.mxu0 0
      %965 = vmatprep.subr.bf16.mxu0 0
      %966 = vmatpush1.bf16.msra.mxu0 0
      %967 = vmatprep.subr.bf16.mxu0 0
      %968 = vmatpush1.bf16.msra.mxu0 0
      %969 = vmatprep.subr.bf16.mxu0 0
      %970 = vmatpush1.bf16.msra.mxu0 0
      %971 = vmatprep.subr.bf16.mxu0 0
      %972 = vmatpush1.bf16.msra.mxu0 0
      %973 = vmatprep.subr.bf16.mxu0 0
      %974 = vmatpush1.bf16.msra.mxu0 0
      %975 = vmatprep.subr.bf16.mxu0 0
      %976 = vmatpush1.bf16.msra.mxu0 0
      %977 = vmatprep.subr.bf16.mxu0 0
      %978 = vmatpush1.bf16.msra.mxu0 0
      %979 = vmatprep.subr.bf16.mxu0 0
      %980 = vmatpush1.bf16.msra.mxu0 0
      %981 = vmatprep.subr.bf16.mxu0 0
      %982 = vmatpush1.bf16.msra.mxu0 0
      %983 = vmatprep.subr.bf16.mxu0 0
      %984 = vmatpush1.bf16.msra.mxu0 0
      %985 = vmatprep.subr.bf16.mxu0 0
      %986 = vmatpush1.bf16.msra.mxu0 0
      %987 = vmatprep.mubr.bf16.mxu0 0
      %988 = vmatmul.mubr.bf16.gmra.mrb[0].mxu0 %v953
      %v989 = vpop.f32.mrb[0].mxu0
      %v990 = vadd.f32 0.0, %v989
      %v991 = vpop.f32.mrb[0].mxu0
      %v992 = vpop.f32.mrb[0].mxu0
      %v993 = vadd.f32 0.0, %v992
      %v994 = vpop.f32.mrb[0].mxu0
      %995 = vdwg.mxu0
      %996 = vst.msk [vmem:[#allocation3] sm:$0xff] %vm877, %v990
      %997 = vst.msk [vmem:[#allocation3 + $0x8] sm:$0xff] %vm877, %v993
      %998 = vrot.lane.b32.xlu0 %v873, 120
      %v999 = vpop.permute.xlu0 %998
      %1000 = vrot.lane.b32.xlu0 %v873, 88
      %v1001 = vpop.permute.xlu0 %1000
      %v1003 = vsel %vm877, %v999, 0
      %v1006 = vsel %vm877, %v1001, 0
      %1008 = vmatprep.subr.bf16.mxu0 0
      %1009 = vmatpush1.bf16.xpose.msra.mxu0 %v1006
      %1010 = vmatprep.subr.bf16.mxu0 0
      %1011 = vmatpush1.bf16.xpose.msra.mxu0 0
      %1012 = vmatprep.subr.bf16.mxu0 0
      %1013 = vmatpush1.bf16.xpose.msra.mxu0 0
      %1014 = vmatprep.subr.bf16.mxu0 0
      %1015 = vmatpush1.bf16.xpose.msra.mxu0 0
      %1016 = vmatprep.subr.bf16.mxu0 0
      %1017 = vmatpush1.bf16.xpose.msra.mxu0 0
      %1018 = vmatprep.subr.bf16.mxu0 0
      %1019 = vmatpush1.bf16.xpose.msra.mxu0 0
      %1020 = vmatprep.subr.bf16.mxu0 0
      %1021 = vmatpush1.bf16.xpose.msra.mxu0 0
      %1022 = vmatprep.subr.bf16.mxu0 0
      %1023 = vmatpush1.bf16.xpose.msra.mxu0 0
      %1024 = vmatprep.subr.bf16.mxu0 0
      %1025 = vmatpush1.bf16.xpose.msra.mxu0 0
      %1026 = vmatprep.subr.bf16.mxu0 0
      %1027 = vmatpush1.bf16.xpose.msra.mxu0 0
      %1028 = vmatprep.subr.bf16.mxu0 0
      %1029 = vmatpush1.bf16.xpose.msra.mxu0 0
      %1030 = vmatprep.subr.bf16.mxu0 0
      %1031 = vmatpush1.bf16.xpose.msra.mxu0 0
      %1032 = vmatprep.subr.bf16.mxu0 0
      %1033 = vmatpush1.bf16.xpose.msra.mxu0 0
      %1034 = vmatprep.subr.bf16.mxu0 0
      %1035 = vmatpush1.bf16.xpose.msra.mxu0 0
      %1036 = vmatprep.subr.bf16.mxu0 0
      %1037 = vmatpush1.bf16.xpose.msra.mxu0 0
      %1038 = vmatprep.subr.bf16.mxu0 0
      %1039 = vmatpush1.bf16.xpose.msra.mxu0 0
      %1040 = vmatprep.mubr.bf16.mxu0 0
      %1041 = vmatmul.mubr.bf16.gmra.mrb[0].mxu0 %v1003
      %v1042 = vpop.f32.mrb[0].mxu0
      %v1043 = vadd.f32 %v871, %v1042
      %v1044 = vpop.f32.mrb[0].mxu0
      %v1045 = vpop.f32.mrb[0].mxu0
      %v1046 = vadd.f32 %v872, %v1045
      %v1047 = vpop.f32.mrb[0].mxu0
      %1048 = vdwg.mxu0
      %v1049 = vsel %vm925, %v1043, -inf
      %1050 = vmax.xlane.f32.xlu0 %v1049
      %v1051 = vpop.xlane.xlu0 %1050
      %v1052 = vsel %vm925, %v1046, -inf
      %1053 = vmax.xlane.f32.xlu0 %v1052
      %v1054 = vpop.xlane.xlu0 %1053
      %v1055 = vsub.f32 %v1043, %v1051
      %v1056 = vsub.f32 %v1046, %v1054
      %v1057 = vmul.f32 %v1055, 1.442695
      %v1058 = vpow.pop %v1057
      %v1059 = vmul.f32 %v1056, 1.442695
      %v1060 = vpow.pop %v1059
      %v1061 = vsel %vm925, %v1058, 0.0
      %1062 = vadd.xlane.f32.xlu0 %v1061
      %v1063 = vpop.xlane.xlu0 %1062
      %v1064 = vsel %vm925, %v1060, 0.0
      %1065 = vadd.xlane.f32.xlu0 %v1064
      %v1066 = vpop.xlane.xlu0 %1065
      %v1067 = vrcp.pop %v1063
      %v1068 = vrcp.pop %v1066
      %v1069 = vmul.f32 %v1058, %v1067
      %v1070 = vmul.f32 %v1060, %v1068
      %v1071 = vpack.c.bf16 %v1070, %v1069
      %1072 = vrot.lane.b32.xlu0 %v873, 56
      %v1073 = vpop.permute.xlu0 %1072
      %v1076 = vsel %vm925, %v1071, 0
      %1078 = vmatprep.subr.bf16.mxu0 0
      %1079 = vmatpush1.bf16.msra.mxu0 %v1073
      %1080 = vmatprep.subr.bf16.mxu0 0
      %1081 = vmatpush1.bf16.msra.mxu0 0
      %1082 = vmatprep.subr.bf16.mxu0 0
      %1083 = vmatpush1.bf16.msra.mxu0 0
      %1084 = vmatprep.subr.bf16.mxu0 0
      %1085 = vmatpush1.bf16.msra.mxu0 0
      %1086 = vmatprep.subr.bf16.mxu0 0
      %1087 = vmatpush1.bf16.msra.mxu0 0
      %1088 = vmatprep.subr.bf16.mxu0 0
      %1089 = vmatpush1.bf16.msra.mxu0 0
      %1090 = vmatprep.subr.bf16.mxu0 0
      %1091 = vmatpush1.bf16.msra.mxu0 0
      %1092 = vmatprep.subr.bf16.mxu0 0
      %1093 = vmatpush1.bf16.msra.mxu0 0
      %1094 = vmatprep.subr.bf16.mxu0 0
      %1095 = vmatpush1.bf16.msra.mxu0 0
      %1096 = vmatprep.subr.bf16.mxu0 0
      %1097 = vmatpush1.bf16.msra.mxu0 0
      %1098 = vmatprep.subr.bf16.mxu0 0
      %1099 = vmatpush1.bf16.msra.mxu0 0
      %1100 = vmatprep.subr.bf16.mxu0 0
      %1101 = vmatpush1.bf16.msra.mxu0 0
      %1102 = vmatprep.subr.bf16.mxu0 0
      %1103 = vmatpush1.bf16.msra.mxu0 0
      %1104 = vmatprep.subr.bf16.mxu0 0
      %1105 = vmatpush1.bf16.msra.mxu0 0
      %1106 = vmatprep.subr.bf16.mxu0 0
      %1107 = vmatpush1.bf16.msra.mxu0 0
      %1108 = vmatprep.subr.bf16.mxu0 0
      %1109 = vmatpush1.bf16.msra.mxu0 0
      %1110 = vmatprep.mubr.bf16.mxu0 0
      %1111 = vmatmul.mubr.bf16.gmra.mrb[0].mxu0 %v1076
      %v1112 = vpop.f32.mrb[0].mxu0
      %v1113 = vadd.f32 0.0, %v1112
      %v1114 = vpop.f32.mrb[0].mxu0
      %v1115 = vpop.f32.mrb[0].mxu0
      %v1116 = vadd.f32 0.0, %v1115
      %v1117 = vpop.f32.mrb[0].mxu0
      %1118 = vdwg.mxu0
      %1121 = vrot.lane.b32.xlu0 %v1113, 8
      %v1122 = vpop.permute.xlu0 %1121
      %1123 = vrot.lane.b32.xlu0 %v1116, 8
      %v1124 = vpop.permute.xlu0 %1123
      %vm1127 = vcmask 130112
      %1128 = vst.msk [vmem:[#allocation3] sm:$0xff] %vm1127, %v1122
      %1129 = vst.msk [vmem:[#allocation3 + $0x8] sm:$0xff] %vm1127, %v1124
      %1130 = vrot.lane.b32.xlu0 %v873, 112
      %v1131 = vpop.permute.xlu0 %1130
      %1132 = vrot.lane.b32.xlu0 %v873, 80
      %v1133 = vpop.permute.xlu0 %1132
      %v1135 = vsel %vm877, %v1131, 0
      %v1138 = vsel %vm877, %v1133, 0
      %1140 = vmatprep.subr.bf16.mxu0 0
      %1141 = vmatpush1.bf16.xpose.msra.mxu0 %v1138
      %1142 = vmatprep.subr.bf16.mxu0 0
      %1143 = vmatpush1.bf16.xpose.msra.mxu0 0
      %1144 = vmatprep.subr.bf16.mxu0 0
      %1145 = vmatpush1.bf16.xpose.msra.mxu0 0
      %1146 = vmatprep.subr.bf16.mxu0 0
      %1147 = vmatpush1.bf16.xpose.msra.mxu0 0
      %1148 = vmatprep.subr.bf16.mxu0 0
      %1149 = vmatpush1.bf16.xpose.msra.mxu0 0
      %1150 = vmatprep.subr.bf16.mxu0 0
      %1151 = vmatpush1.bf16.xpose.msra.mxu0 0
      %1152 = vmatprep.subr.bf16.mxu0 0
      %1153 = vmatpush1.bf16.xpose.msra.mxu0 0
      %1154 = vmatprep.subr.bf16.mxu0 0
      %1155 = vmatpush1.bf16.xpose.msra.mxu0 0
      %1156 = vmatprep.subr.bf16.mxu0 0
      %1157 = vmatpush1.bf16.xpose.msra.mxu0 0
      %1158 = vmatprep.subr.bf16.mxu0 0
      %1159 = vmatpush1.bf16.xpose.msra.mxu0 0
      %1160 = vmatprep.subr.bf16.mxu0 0
      %1161 = vmatpush1.bf16.xpose.msra.mxu0 0
      %1162 = vmatprep.subr.bf16.mxu0 0
      %1163 = vmatpush1.bf16.xpose.msra.mxu0 0
      %1164 = vmatprep.subr.bf16.mxu0 0
      %1165 = vmatpush1.bf16.xpose.msra.mxu0 0
      %1166 = vmatprep.subr.bf16.mxu0 0
      %1167 = vmatpush1.bf16.xpose.msra.mxu0 0
      %1168 = vmatprep.subr.bf16.mxu0 0
      %1169 = vmatpush1.bf16.xpose.msra.mxu0 0
      %1170 = vmatprep.subr.bf16.mxu0 0
      %1171 = vmatpush1.bf16.xpose.msra.mxu0 0
      %1172 = vmatprep.mubr.bf16.mxu0 0
      %1173 = vmatmul.mubr.bf16.gmra.mrb[0].mxu0 %v1135
      %v1174 = vpop.f32.mrb[0].mxu0
      %v1175 = vadd.f32 %v871, %v1174
      %v1176 = vpop.f32.mrb[0].mxu0
      %v1177 = vpop.f32.mrb[0].mxu0
      %v1178 = vadd.f32 %v872, %v1177
      %v1179 = vpop.f32.mrb[0].mxu0
      %1180 = vdwg.mxu0
      %v1181 = vsel %vm925, %v1175, -inf
      %1182 = vmax.xlane.f32.xlu0 %v1181
      %v1183 = vpop.xlane.xlu0 %1182
      %v1184 = vsel %vm925, %v1178, -inf
      %1185 = vmax.xlane.f32.xlu0 %v1184
      %v1186 = vpop.xlane.xlu0 %1185
      %v1187 = vsub.f32 %v1175, %v1183
      %v1188 = vsub.f32 %v1178, %v1186
      %v1189 = vmul.f32 %v1187, 1.442695
      %v1190 = vpow.pop %v1189
      %v1191 = vmul.f32 %v1188, 1.442695
      %v1192 = vpow.pop %v1191
      %v1193 = vsel %vm925, %v1190, 0.0
      %1194 = vadd.xlane.f32.xlu0 %v1193
      %v1195 = vpop.xlane.xlu0 %1194
      %v1196 = vsel %vm925, %v1192, 0.0
      %1197 = vadd.xlane.f32.xlu0 %v1196
      %v1198 = vpop.xlane.xlu0 %1197
      %v1199 = vrcp.pop %v1195
      %v1200 = vrcp.pop %v1198
      %v1201 = vmul.f32 %v1190, %v1199
      %v1202 = vmul.f32 %v1192, %v1200
      %v1203 = vpack.c.bf16 %v1202, %v1201
      %1204 = vrot.lane.b32.xlu0 %v873, 48
      %v1205 = vpop.permute.xlu0 %1204
      %v1208 = vsel %vm925, %v1203, 0
      %1210 = vmatprep.subr.bf16.mxu0 0
      %1211 = vmatpush1.bf16.msra.mxu0 %v1205
      %1212 = vmatprep.subr.bf16.mxu0 0
      %1213 = vmatpush1.bf16.msra.mxu0 0
      %1214 = vmatprep.subr.bf16.mxu0 0
      %1215 = vmatpush1.bf16.msra.mxu0 0
      %1216 = vmatprep.subr.bf16.mxu0 0
      %1217 = vmatpush1.bf16.msra.mxu0 0
      %1218 = vmatprep.subr.bf16.mxu0 0
      %1219 = vmatpush1.bf16.msra.mxu0 0
      %1220 = vmatprep.subr.bf16.mxu0 0
      %1221 = vmatpush1.bf16.msra.mxu0 0
      %1222 = vmatprep.subr.bf16.mxu0 0
      %1223 = vmatpush1.bf16.msra.mxu0 0
      %1224 = vmatprep.subr.bf16.mxu0 0
      %1225 = vmatpush1.bf16.msra.mxu0 0
      %1226 = vmatprep.subr.bf16.mxu0 0
      %1227 = vmatpush1.bf16.msra.mxu0 0
      %1228 = vmatprep.subr.bf16.mxu0 0
      %1229 = vmatpush1.bf16.msra.mxu0 0
      %1230 = vmatprep.subr.bf16.mxu0 0
      %1231 = vmatpush1.bf16.msra.mxu0 0
      %1232 = vmatprep.subr.bf16.mxu0 0
      %1233 = vmatpush1.bf16.msra.mxu0 0
      %1234 = vmatprep.subr.bf16.mxu0 0
      %1235 = vmatpush1.bf16.msra.mxu0 0
      %1236 = vmatprep.subr.bf16.mxu0 0
      %1237 = vmatpush1.bf16.msra.mxu0 0
      %1238 = vmatprep.subr.bf16.mxu0 0
      %1239 = vmatpush1.bf16.msra.mxu0 0
      %1240 = vmatprep.subr.bf16.mxu0 0
      %1241 = vmatpush1.bf16.msra.mxu0 0
      %1242 = vmatprep.mubr.bf16.mxu0 0
      %1243 = vmatmul.mubr.bf16.gmra.mrb[0].mxu0 %v1208
      %v1244 = vpop.f32.mrb[0].mxu0
      %v1245 = vadd.f32 0.0, %v1244
      %v1246 = vpop.f32.mrb[0].mxu0
      %v1247 = vpop.f32.mrb[0].mxu0
      %v1248 = vadd.f32 0.0, %v1247
      %v1249 = vpop.f32.mrb[0].mxu0
      %1250 = vdwg.mxu0
      %1253 = vrot.lane.b32.xlu0 %v1245, 16
      %v1254 = vpop.permute.xlu0 %1253
      %1255 = vrot.lane.b32.xlu0 %v1248, 16
      %v1256 = vpop.permute.xlu0 %1255
      %vm1259 = vcmask 195712
      %1260 = vst.msk [vmem:[#allocation3] sm:$0xff] %vm1259, %v1254
      %1261 = vst.msk [vmem:[#allocation3 + $0x8] sm:$0xff] %vm1259, %v1256
      %1262 = vrot.lane.b32.xlu0 %v873, 104
      %v1263 = vpop.permute.xlu0 %1262
      %1264 = vrot.lane.b32.xlu0 %v873, 72
      %v1265 = vpop.permute.xlu0 %1264
      %v1267 = vsel %vm877, %v1263, 0
      %v1270 = vsel %vm877, %v1265, 0
      %1272 = vmatprep.subr.bf16.mxu0 0
      %1273 = vmatpush1.bf16.xpose.msra.mxu0 %v1270
      %1274 = vmatprep.subr.bf16.mxu0 0
      %1275 = vmatpush1.bf16.xpose.msra.mxu0 0
      %1276 = vmatprep.subr.bf16.mxu0 0
      %1277 = vmatpush1.bf16.xpose.msra.mxu0 0
      %1278 = vmatprep.subr.bf16.mxu0 0
      %1279 = vmatpush1.bf16.xpose.msra.mxu0 0
      %1280 = vmatprep.subr.bf16.mxu0 0
      %1281 = vmatpush1.bf16.xpose.msra.mxu0 0
      %1282 = vmatprep.subr.bf16.mxu0 0
      %1283 = vmatpush1.bf16.xpose.msra.mxu0 0
      %1284 = vmatprep.subr.bf16.mxu0 0
      %1285 = vmatpush1.bf16.xpose.msra.mxu0 0
      %1286 = vmatprep.subr.bf16.mxu0 0
      %1287 = vmatpush1.bf16.xpose.msra.mxu0 0
      %1288 = vmatprep.subr.bf16.mxu0 0
      %1289 = vmatpush1.bf16.xpose.msra.mxu0 0
      %1290 = vmatprep.subr.bf16.mxu0 0
      %1291 = vmatpush1.bf16.xpose.msra.mxu0 0
      %1292 = vmatprep.subr.bf16.mxu0 0
      %1293 = vmatpush1.bf16.xpose.msra.mxu0 0
      %1294 = vmatprep.subr.bf16.mxu0 0
      %1295 = vmatpush1.bf16.xpose.msra.mxu0 0
      %1296 = vmatprep.subr.bf16.mxu0 0
      %1297 = vmatpush1.bf16.xpose.msra.mxu0 0
      %1298 = vmatprep.subr.bf16.mxu0 0
      %1299 = vmatpush1.bf16.xpose.msra.mxu0 0
      %1300 = vmatprep.subr.bf16.mxu0 0
      %1301 = vmatpush1.bf16.xpose.msra.mxu0 0
      %1302 = vmatprep.subr.bf16.mxu0 0
      %1303 = vmatpush1.bf16.xpose.msra.mxu0 0
      %1304 = vmatprep.mubr.bf16.mxu0 0
      %1305 = vmatmul.mubr.bf16.gmra.mrb[0].mxu0 %v1267
      %v1306 = vpop.f32.mrb[0].mxu0
      %v1307 = vadd.f32 %v871, %v1306
      %v1308 = vpop.f32.mrb[0].mxu0
      %v1309 = vpop.f32.mrb[0].mxu0
      %v1310 = vadd.f32 %v872, %v1309
      %v1311 = vpop.f32.mrb[0].mxu0
      %1312 = vdwg.mxu0
      %v1313 = vsel %vm925, %v1307, -inf
      %1314 = vmax.xlane.f32.xlu0 %v1313
      %v1315 = vpop.xlane.xlu0 %1314
      %v1316 = vsel %vm925, %v1310, -inf
      %1317 = vmax.xlane.f32.xlu0 %v1316
      %v1318 = vpop.xlane.xlu0 %1317
      %v1319 = vsub.f32 %v1307, %v1315
      %v1320 = vsub.f32 %v1310, %v1318
      %v1321 = vmul.f32 %v1319, 1.442695
      %v1322 = vpow.pop %v1321
      %v1323 = vmul.f32 %v1320, 1.442695
      %v1324 = vpow.pop %v1323
      %v1325 = vsel %vm925, %v1322, 0.0
      %1326 = vadd.xlane.f32.xlu0 %v1325
      %v1327 = vpop.xlane.xlu0 %1326
      %v1328 = vsel %vm925, %v1324, 0.0
      %1329 = vadd.xlane.f32.xlu0 %v1328
      %v1330 = vpop.xlane.xlu0 %1329
      %v1331 = vrcp.pop %v1327
      %v1332 = vrcp.pop %v1330
      %v1333 = vmul.f32 %v1322, %v1331
      %v1334 = vmul.f32 %v1324, %v1332
      %v1335 = vpack.c.bf16 %v1334, %v1333
      %1336 = vrot.lane.b32.xlu0 %v873, 40
      %v1337 = vpop.permute.xlu0 %1336
      %v1340 = vsel %vm925, %v1335, 0
      %1342 = vmatprep.subr.bf16.mxu0 0
      %1343 = vmatpush1.bf16.msra.mxu0 %v1337
      %1344 = vmatprep.subr.bf16.mxu0 0
      %1345 = vmatpush1.bf16.msra.mxu0 0
      %1346 = vmatprep.subr.bf16.mxu0 0
      %1347 = vmatpush1.bf16.msra.mxu0 0
      %1348 = vmatprep.subr.bf16.mxu0 0
      %1349 = vmatpush1.bf16.msra.mxu0 0
      %1350 = vmatprep.subr.bf16.mxu0 0
      %1351 = vmatpush1.bf16.msra.mxu0 0
      %1352 = vmatprep.subr.bf16.mxu0 0
      %1353 = vmatpush1.bf16.msra.mxu0 0
      %1354 = vmatprep.subr.bf16.mxu0 0
      %1355 = vmatpush1.bf16.msra.mxu0 0
      %1356 = vmatprep.subr.bf16.mxu0 0
      %1357 = vmatpush1.bf16.msra.mxu0 0
      %1358 = vmatprep.subr.bf16.mxu0 0
      %1359 = vmatpush1.bf16.msra.mxu0 0
      %1360 = vmatprep.subr.bf16.mxu0 0
      %1361 = vmatpush1.bf16.msra.mxu0 0
      %1362 = vmatprep.subr.bf16.mxu0 0
      %1363 = vmatpush1.bf16.msra.mxu0 0
      %1364 = vmatprep.subr.bf16.mxu0 0
      %1365 = vmatpush1.bf16.msra.mxu0 0
      %1366 = vmatprep.subr.bf16.mxu0 0
      %1367 = vmatpush1.bf16.msra.mxu0 0
      %1368 = vmatprep.subr.bf16.mxu0 0
      %1369 = vmatpush1.bf16.msra.mxu0 0
      %1370 = vmatprep.subr.bf16.mxu0 0
      %1371 = vmatpush1.bf16.msra.mxu0 0
      %1372 = vmatprep.subr.bf16.mxu0 0
      %1373 = vmatpush1.bf16.msra.mxu0 0
      %1374 = vmatprep.mubr.bf16.mxu0 0
      %1375 = vmatmul.mubr.bf16.gmra.mrb[0].mxu0 %v1340
      %v1376 = vpop.f32.mrb[0].mxu0
      %v1377 = vadd.f32 0.0, %v1376
      %v1378 = vpop.f32.mrb[0].mxu0
      %v1379 = vpop.f32.mrb[0].mxu0
      %v1380 = vadd.f32 0.0, %v1379
      %v1381 = vpop.f32.mrb[0].mxu0
      %1382 = vdwg.mxu0
      %1385 = vrot.lane.b32.xlu0 %v1377, 24
      %v1386 = vpop.permute.xlu0 %1385
      %1387 = vrot.lane.b32.xlu0 %v1380, 24
      %v1388 = vpop.permute.xlu0 %1387
      %vm1391 = vcmask 261312
      %1392 = vst.msk [vmem:[#allocation3] sm:$0xff] %vm1391, %v1386
      %1393 = vst.msk [vmem:[#allocation3 + $0x8] sm:$0xff] %vm1391, %v1388
      %v1394 = vld [vmem:[#allocation3] sm:$0xff]
      %v1395 = vld [vmem:[#allocation3 + $0x8] sm:$0xff]
      %v1396 = vpack.c.bf16 %v1395, %v1394
      %v1397 = vld [vmem:[%s701] sm:$0xf]
      %v1398 = vld [vmem:[%s701 + $0x4] sm:$0xf]
      %v1399 = vld [vmem:[%s701 + $0x8] sm:$0xf]
      %v1400 = vld [vmem:[%s701 + $0xc] sm:$0xf]
      %v1401 = vld [vmem:[%s704] sm:$0x1]
      %v1403 = vlaneseq
      %v1404 = vshrl.u32 %v1403, 7
      %v1405 = vsub.s32 0, %v1404
      %v1406 = vrot.slane %v1401, %v1405
      %v1412 = vunpack.c.l.b16 %v1397
      %v1413 = vunpack.c.l.b16 %v1398
      %v1414 = vunpack.c.l.b16 %v1399
      %v1415 = vunpack.c.l.b16 %v1400
      %v1416 = vpack.c.b16 %v1413, %v1412
      %v1417 = vpack.c.b16 %v1415, %v1414
      %v1421 = vsel %vm752, %v1396, 0
      %1423 = vmatprep.subr.bf16.mxu0 0
      %1424 = vmatpush1.bf16.msra.mxu0 %v1416
      %1425 = vmatprep.subr.bf16.mxu0 0
      %1426 = vmatpush1.bf16.msra.mxu0 %v1417
      %1427 = vmatprep.subr.bf16.mxu0 0
      %1428 = vmatpush1.bf16.msra.mxu0 0
      %1429 = vmatprep.subr.bf16.mxu0 0
      %1430 = vmatpush1.bf16.msra.mxu0 0
      %1431 = vmatprep.subr.bf16.mxu0 0
      %1432 = vmatpush1.bf16.msra.mxu0 0
      %1433 = vmatprep.subr.bf16.mxu0 0
      %1434 = vmatpush1.bf16.msra.mxu0 0
      %1435 = vmatprep.subr.bf16.mxu0 0
      %1436 = vmatpush1.bf16.msra.mxu0 0
      %1437 = vmatprep.subr.bf16.mxu0 0
      %1438 = vmatpush1.bf16.msra.mxu0 0
      %1439 = vmatprep.subr.bf16.mxu0 0
      %1440 = vmatpush1.bf16.msra.mxu0 0
      %1441 = vmatprep.subr.bf16.mxu0 0
      %1442 = vmatpush1.bf16.msra.mxu0 0
      %1443 = vmatprep.subr.bf16.mxu0 0
      %1444 = vmatpush1.bf16.msra.mxu0 0
      %1445 = vmatprep.subr.bf16.mxu0 0
      %1446 = vmatpush1.bf16.msra.mxu0 0
      %1447 = vmatprep.subr.bf16.mxu0 0
      %1448 = vmatpush1.bf16.msra.mxu0 0
      %1449 = vmatprep.subr.bf16.mxu0 0
      %1450 = vmatpush1.bf16.msra.mxu0 0
      %1451 = vmatprep.subr.bf16.mxu0 0
      %1452 = vmatpush1.bf16.msra.mxu0 0
      %1453 = vmatprep.subr.bf16.mxu0 0
      %1454 = vmatpush1.bf16.msra.mxu0 0
      %1455 = vmatprep.mubr.bf16.mxu0 0
      %1456 = vmatmul.mubr.bf16.gmra.mrb[0].mxu0 %v1421
      %v1457 = vpop.f32.mrb[0].mxu0
      %v1458 = vadd.f32 %v1406, %v1457
      %v1459 = vpop.f32.mrb[0].mxu0
      %v1460 = vpop.f32.mrb[0].mxu0
      %v1461 = vadd.f32 %v1406, %v1460
      %v1462 = vpop.f32.mrb[0].mxu0
      %1463 = vdwg.mxu0
      %v1464 = vadd.f32 %v748, %v1458
      %v1465 = vadd.f32 %v749, %v1461
      %v1466 = vld [vmem:[%s707] sm:$0x1]
      %v1467 = vld [vmem:[%s710] sm:$0x1]
      %v1468 = vsel %vm752, %v1464, 0.0
      %1469 = vadd.xlane.f32.xlu0 %v1468
      %v1470 = vpop.xlane.xlu0 %1469
      %v1471 = vsel %vm752, %v1465, 0.0
      %1472 = vadd.xlane.f32.xlu0 %v1471
      %v1473 = vpop.xlane.xlu0 %1472
      %v1474 = vmul.f32 %v1470, %v759
      %v1475 = vmul.f32 %v1473, %v759
      %v1476 = vsub.f32 %v1464, %v1474
      %v1477 = vsub.f32 %v1465, %v1475
      %v1478 = vmul.f32 %v1476, %v1476
      %v1479 = vmul.f32 %v1477, %v1477
      %v1480 = vsel %vm752, %v1478, 0.0
      %1481 = vadd.xlane.f32.xlu0 %v1480
      %v1482 = vpop.xlane.xlu0 %1481
      %v1483 = vsel %vm752, %v1479, 0.0
      %1484 = vadd.xlane.f32.xlu0 %v1483
      %v1485 = vpop.xlane.xlu0 %1484
      %v1486 = vmul.f32 %v1482, %v759
      %v1487 = vmul.f32 %v1485, %v759
      %v1488 = vadd.f32 %v1486, 1e-05
      %v1489 = vadd.f32 %v1487, 1e-05
      %v1490 = vrsqrt.pop %v1488
      %v1491 = vrsqrt.pop %v1489
      %v1492 = vmul.f32 %v1476, %v1490
      %v1493 = vmul.f32 %v1477, %v1491
      %v1495 = vlaneseq
      %v1496 = vshrl.u32 %v1495, 7
      %v1497 = vsub.s32 0, %v1496
      %v1498 = vrot.slane %v1466, %v1497
      %v1500 = vmul.f32 %v1492, %v1498
      %v1501 = vmul.f32 %v1493, %v1498
      %v1503 = vlaneseq
      %v1504 = vshrl.u32 %v1503, 7
      %v1505 = vsub.s32 0, %v1504
      %v1506 = vrot.slane %v1467, %v1505
      %v1508 = vadd.f32 %v1500, %v1506
      %v1509 = vadd.f32 %v1501, %v1506
      %v1510 = vpack.c.bf16 %v1509, %v1508
      %v1511 = vld [vmem:[%s715] sm:$0xf]
      %v1512 = vld [vmem:[%s715 + $0x4] sm:$0xf]
      %v1513 = vld [vmem:[%s715 + $0x8] sm:$0xf]
      %v1514 = vld [vmem:[%s715 + $0xc] sm:$0xf]
      %v1515 = vld [vmem:[%s718] sm:$0x1]
      %v1517 = vlaneseq
      %v1518 = vshrl.u32 %v1517, 7
      %v1519 = vsub.s32 0, %v1518
      %v1520 = vrot.slane %v1515, %v1519
      %v1526 = vunpack.c.l.b16 %v1511
      %v1527 = vunpack.c.l.b16 %v1512
      %v1528 = vunpack.c.l.b16 %v1513
      %v1529 = vunpack.c.l.b16 %v1514
      %v1530 = vpack.c.b16 %v1527, %v1526
      %v1531 = vpack.c.b16 %v1529, %v1528
      %v1535 = vsel %vm752, %v1510, 0
      %1537 = vmatprep.subr.bf16.mxu0 0
      %1538 = vmatpush1.bf16.msra.mxu0 %v1530
      %1539 = vmatprep.subr.bf16.mxu0 0
      %1540 = vmatpush1.bf16.msra.mxu0 %v1531
      %1541 = vmatprep.subr.bf16.mxu0 0
      %1542 = vmatpush1.bf16.msra.mxu0 0
      %1543 = vmatprep.subr.bf16.mxu0 0
      %1544 = vmatpush1.bf16.msra.mxu0 0
      %1545 = vmatprep.subr.bf16.mxu0 0
      %1546 = vmatpush1.bf16.msra.mxu0 0
      %1547 = vmatprep.subr.bf16.mxu0 0
      %1548 = vmatpush1.bf16.msra.mxu0 0
      %1549 = vmatprep.subr.bf16.mxu0 0
      %1550 = vmatpush1.bf16.msra.mxu0 0
      %1551 = vmatprep.subr.bf16.mxu0 0
      %1552 = vmatpush1.bf16.msra.mxu0 0
      %1553 = vmatprep.subr.bf16.mxu0 0
      %1554 = vmatpush1.bf16.msra.mxu0 0
      %1555 = vmatprep.subr.bf16.mxu0 0
      %1556 = vmatpush1.bf16.msra.mxu0 0
      %1557 = vmatprep.subr.bf16.mxu0 0
      %1558 = vmatpush1.bf16.msra.mxu0 0
      %1559 = vmatprep.subr.bf16.mxu0 0
      %1560 = vmatpush1.bf16.msra.mxu0 0
      %1561 = vmatprep.subr.bf16.mxu0 0
      %1562 = vmatpush1.bf16.msra.mxu0 0
      %1563 = vmatprep.subr.bf16.mxu0 0
      %1564 = vmatpush1.bf16.msra.mxu0 0
      %1565 = vmatprep.subr.bf16.mxu0 0
      %1566 = vmatpush1.bf16.msra.mxu0 0
      %1567 = vmatprep.subr.bf16.mxu0 0
      %1568 = vmatpush1.bf16.msra.mxu0 0
      %1569 = vmatprep.mubr.bf16.mxu0 0
      %1570 = vmatmul.mubr.bf16.gmra.mrb[0].mxu0 %v1535
      %v1571 = vpop.f32.mrb[0].mxu0
      %v1572 = vadd.f32 %v1520, %v1571
      %v1573 = vpop.f32.mrb[0].mxu0
      %v1574 = vpop.f32.mrb[0].mxu0
      %v1575 = vadd.f32 %v1520, %v1574
      %v1576 = vpop.f32.mrb[0].mxu0
      %1577 = vdwg.mxu0
      %v1578 = vpack.c.bf16 %v1575, %v1572
      %v1579 = vmul.bf16 %v1578, 1071267802
      %v1580 = vxor.u32 %v1579, 2147516416
      %v1582 = vmul.bf16 %v1580, 1069105081
      %v1583 = vpow.bf16.pop %v1582
      %v1584 = vadd.bf16 %v1583, 1065369472
      %v1585 = vrcp.bf16.pop %v1584
      %v1586 = vmul.bf16 1065369472, %v1585
      %v1587 = vmul.bf16 %v1578, %v1586
      %v1588 = vld [vmem:[%s723] sm:$0xf]
      %v1589 = vld [vmem:[%s723 + $0x4] sm:$0xf]
      %v1590 = vld [vmem:[%s723 + $0x8] sm:$0xf]
      %v1591 = vld [vmem:[%s723 + $0xc] sm:$0xf]
      %v1592 = vld [vmem:[%s723 + $0x10] sm:$0xf]
      %v1593 = vld [vmem:[%s723 + $0x14] sm:$0xf]
      %v1594 = vld [vmem:[%s723 + $0x18] sm:$0xf]
      %v1595 = vld [vmem:[%s723 + $0x1c] sm:$0xf]
      %v1596 = vld [vmem:[%s723 + $0x20] sm:$0xf]
      %v1597 = vld [vmem:[%s723 + $0x24] sm:$0xf]
      %v1598 = vld [vmem:[%s723 + $0x28] sm:$0xf]
      %v1599 = vld [vmem:[%s723 + $0x2c] sm:$0xf]
      %v1600 = vld [vmem:[%s723 + $0x30] sm:$0xf]
      %v1601 = vld [vmem:[%s723 + $0x34] sm:$0xf]
      %v1602 = vld [vmem:[%s723 + $0x38] sm:$0xf]
      %v1603 = vld [vmem:[%s723 + $0x3c] sm:$0xf]
      %v1604 = vld [vmem:[%s726] sm:$0x1]
      %v1606 = vlaneseq
      %v1607 = vshrl.u32 %v1606, 7
      %v1608 = vsub.s32 0, %v1607
      %v1609 = vrot.slane %v1604, %v1608
      %v1627 = vunpack.c.l.b16 %v1588
      %v1628 = vunpack.c.l.b16 %v1589
      %v1629 = vunpack.c.l.b16 %v1590
      %v1630 = vunpack.c.l.b16 %v1591
      %v1631 = vunpack.c.l.b16 %v1592
      %v1632 = vunpack.c.l.b16 %v1593
      %v1633 = vunpack.c.l.b16 %v1594
      %v1634 = vunpack.c.l.b16 %v1595
      %v1635 = vunpack.c.l.b16 %v1596
      %v1636 = vunpack.c.l.b16 %v1597
      %v1637 = vunpack.c.l.b16 %v1598
      %v1638 = vunpack.c.l.b16 %v1599
      %v1639 = vunpack.c.l.b16 %v1600
      %v1640 = vunpack.c.l.b16 %v1601
      %v1641 = vunpack.c.l.b16 %v1602
      %v1642 = vunpack.c.l.b16 %v1603
      %v1643 = vpack.c.b16 %v1628, %v1627
      %v1644 = vpack.c.b16 %v1630, %v1629
      %v1645 = vpack.c.b16 %v1632, %v1631
      %v1646 = vpack.c.b16 %v1634, %v1633
      %v1647 = vpack.c.b16 %v1636, %v1635
      %v1648 = vpack.c.b16 %v1638, %v1637
      %v1649 = vpack.c.b16 %v1640, %v1639
      %v1650 = vpack.c.b16 %v1642, %v1641
      %1659 = vmatprep.subr.bf16.mxu0 0
      %1660 = vmatpush1.bf16.msra.mxu0 %v1643
      %1661 = vmatprep.subr.bf16.mxu0 0
      %1662 = vmatpush1.bf16.msra.mxu0 %v1644
      %1663 = vmatprep.subr.bf16.mxu0 0
      %1664 = vmatpush1.bf16.msra.mxu0 %v1645
      %1665 = vmatprep.subr.bf16.mxu0 0
      %1666 = vmatpush1.bf16.msra.mxu0 %v1646
      %1667 = vmatprep.subr.bf16.mxu0 0
      %1668 = vmatpush1.bf16.msra.mxu0 %v1647
      %1669 = vmatprep.subr.bf16.mxu0 0
      %1670 = vmatpush1.bf16.msra.mxu0 %v1648
      %1671 = vmatprep.subr.bf16.mxu0 0
      %1672 = vmatpush1.bf16.msra.mxu0 %v1649
      %1673 = vmatprep.subr.bf16.mxu0 0
      %1674 = vmatpush1.bf16.msra.mxu0 %v1650
      %1675 = vmatprep.subr.bf16.mxu0 0
      %1676 = vmatpush1.bf16.msra.mxu0 0
      %1677 = vmatprep.subr.bf16.mxu0 0
      %1678 = vmatpush1.bf16.msra.mxu0 0
      %1679 = vmatprep.subr.bf16.mxu0 0
      %1680 = vmatpush1.bf16.msra.mxu0 0
      %1681 = vmatprep.subr.bf16.mxu0 0
      %1682 = vmatpush1.bf16.msra.mxu0 0
      %1683 = vmatprep.subr.bf16.mxu0 0
      %1684 = vmatpush1.bf16.msra.mxu0 0
      %1685 = vmatprep.subr.bf16.mxu0 0
      %1686 = vmatpush1.bf16.msra.mxu0 0
      %1687 = vmatprep.subr.bf16.mxu0 0
      %1688 = vmatpush1.bf16.msra.mxu0 0
      %1689 = vmatprep.subr.bf16.mxu0 0
      %1690 = vmatpush1.bf16.msra.mxu0 0
      %1691 = vmatprep.mubr.bf16.mxu0 0
      %1692 = vmatmul.mubr.bf16.gmra.mrb[0].mxu0 %v1587
      %v1693 = vpop.f32.mrb[0].mxu0
      %v1694 = vadd.f32 %v1609, %v1693
      %v1695 = vpop.f32.mrb[0].mxu0
      %v1696 = vpop.f32.mrb[0].mxu0
      %v1697 = vadd.f32 %v1609, %v1696
      %v1698 = vpop.f32.mrb[0].mxu0
      %1699 = vdwg.mxu0
      %v1700 = vadd.f32 %v1464, %v1694
      %v1701 = vadd.f32 %v1465, %v1697
      %1702 = vst.msk [vmem:[#allocation2] sm:$0xff] %vm752, %v1700
      %1703 = vst.msk [vmem:[#allocation2 + $0x8] sm:$0xff] %vm752, %v1701
      %v1704 = vld [vmem:[%s13] sm:$0x1]
      %v1705 = vld [vmem:[%s14] sm:$0x1]
      %v1706 = vsel %vm752, %v1700, 0.0
      %1707 = vadd.xlane.f32.xlu0 %v1706
      %v1708 = vpop.xlane.xlu0 %1707
      %v1709 = vsel %vm752, %v1701, 0.0
      %1710 = vadd.xlane.f32.xlu0 %v1709
      %v1711 = vpop.xlane.xlu0 %1710
      %v1712 = vmul.f32 %v1708, %v759
      %v1713 = vmul.f32 %v1711, %v759
      %v1714 = vsub.f32 %v1700, %v1712
      %v1715 = vsub.f32 %v1701, %v1713
      %v1716 = vmul.f32 %v1714, %v1714
      %v1717 = vmul.f32 %v1715, %v1715
      %v1718 = vsel %vm752, %v1716, 0.0
      %1719 = vadd.xlane.f32.xlu0 %v1718
      %v1720 = vpop.xlane.xlu0 %1719
      %v1721 = vsel %vm752, %v1717, 0.0
      %1722 = vadd.xlane.f32.xlu0 %v1721
      %v1723 = vpop.xlane.xlu0 %1722
      %v1724 = vmul.f32 %v1720, %v759
      %v1725 = vmul.f32 %v1723, %v759
      %v1726 = vadd.f32 %v1724, 1e-05
      %v1727 = vadd.f32 %v1725, 1e-05
      %v1728 = vrsqrt.pop %v1726
      %v1729 = vrsqrt.pop %v1727
      %v1730 = vmul.f32 %v1714, %v1728
      %v1731 = vmul.f32 %v1715, %v1729
      %v1733 = vlaneseq
      %v1734 = vshrl.u32 %v1733, 7
      %v1735 = vsub.s32 0, %v1734
      %v1736 = vrot.slane %v1704, %v1735
      %v1738 = vmul.f32 %v1730, %v1736
      %v1739 = vmul.f32 %v1731, %v1736
      %v1741 = vlaneseq
      %v1742 = vshrl.u32 %v1741, 7
      %v1743 = vsub.s32 0, %v1742
      %v1744 = vrot.slane %v1705, %v1743
      %v1746 = vadd.f32 %v1738, %v1744
      %v1747 = vadd.f32 %v1739, %v1744
      %v1748 = vpack.c.bf16 %v1747, %v1746
      %v1749 = vld [vmem:[%s15] sm:$0xf]
      %v1750 = vld [vmem:[%s15 + $0x4] sm:$0xf]
      %v1751 = vld [vmem:[%s15 + $0x8] sm:$0xf]
      %v1752 = vld [vmem:[%s15 + $0xc] sm:$0xf]
      %v1757 = vunpack.c.l.b16 %v1749
      %v1758 = vunpack.c.l.b16 %v1750
      %v1759 = vunpack.c.l.b16 %v1751
      %v1760 = vunpack.c.l.b16 %v1752
      %v1761 = vpack.c.b16 %v1758, %v1757
      %v1762 = vpack.c.b16 %v1760, %v1759
      %v1766 = vsel %vm752, %v1748, 0
      %1768 = vmatprep.subr.bf16.mxu0 0
      %1769 = vmatpush1.bf16.msra.mxu0 %v1761
      %1770 = vmatprep.subr.bf16.mxu0 0
      %1771 = vmatpush1.bf16.msra.mxu0 %v1762
      %1772 = vmatprep.subr.bf16.mxu0 0
      %1773 = vmatpush1.bf16.msra.mxu0 0
      %1774 = vmatprep.subr.bf16.mxu0 0
      %1775 = vmatpush1.bf16.msra.mxu0 0
      %1776 = vmatprep.subr.bf16.mxu0 0
      %1777 = vmatpush1.bf16.msra.mxu0 0
      %1778 = vmatprep.subr.bf16.mxu0 0
      %1779 = vmatpush1.bf16.msra.mxu0 0
      %1780 = vmatprep.subr.bf16.mxu0 0
      %1781 = vmatpush1.bf16.msra.mxu0 0
      %1782 = vmatprep.subr.bf16.mxu0 0
      %1783 = vmatpush1.bf16.msra.mxu0 0
      %1784 = vmatprep.subr.bf16.mxu0 0
      %1785 = vmatpush1.bf16.msra.mxu0 0
      %1786 = vmatprep.subr.bf16.mxu0 0
      %1787 = vmatpush1.bf16.msra.mxu0 0
      %1788 = vmatprep.subr.bf16.mxu0 0
      %1789 = vmatpush1.bf16.msra.mxu0 0
      %1790 = vmatprep.subr.bf16.mxu0 0
      %1791 = vmatpush1.bf16.msra.mxu0 0
      %1792 = vmatprep.subr.bf16.mxu0 0
      %1793 = vmatpush1.bf16.msra.mxu0 0
      %1794 = vmatprep.subr.bf16.mxu0 0
      %1795 = vmatpush1.bf16.msra.mxu0 0
      %1796 = vmatprep.subr.bf16.mxu0 0
      %1797 = vmatpush1.bf16.msra.mxu0 0
      %1798 = vmatprep.subr.bf16.mxu0 0
      %1799 = vmatpush1.bf16.msra.mxu0 0
      %1800 = vmatprep.mubr.bf16.mxu0 0
      %1801 = vmatmul.mubr.bf16.gmra.mrb[0].mxu0 %v1766
      %v1802 = vpop.f32.mrb[0].mxu0
      %v1803 = vadd.f32 0.0, %v1802
      %v1804 = vpop.f32.mrb[0].mxu0
      %v1805 = vpop.f32.mrb[0].mxu0
      %v1806 = vadd.f32 0.0, %v1805
      %v1807 = vpop.f32.mrb[0].mxu0
      %1808 = vdwg.mxu0
      %1809 = vst.msk [vmem:[%s735] sm:$0xff] %vm925, %v1803
      %1810 = vst.msk [vmem:[%s735 + $0x8] sm:$0xff] %vm925, %v1806
      %p1811 = scmp.lt.s32.totalorder %s32, 1
      %s1812 = scalar_select %p1811, %s32, 1
      %p1813 = scmp.lt.s32.totalorder %s31, 1
      %s1814 = scalar_select %p1813, %s31, 1
      %s1815 = smul.addr %s1814, 2
      %s1816 = smul.addr %s1812, 4
      %s1817 = sadd.s32 %s1815, %s1816
      %s1818 = smul.addr %s1817, 8
      %s1819 = scalar_lea.vmem %s16, %s1818
      // Predicated region
      $region89: #{text_encoder_forward.1} parent=83 // pred_check
        %p1820 = pneg %p460
      $region90: #{text_encoder_forward.1} parent=83 // pred_check_branch
        %1822 = sbr.rel (%p1820) target = $region92
      $region91: #{text_encoder_forward.1} parent=83 // pred_region
        _
      $region92: #{text_encoder_forward.1} parent=83 // pred_fallthru
        _
    $region84: #{text_encoder_forward.1} parent=5 // pred_fallthru
      _
    %p1823 = scmp.le.s32.totalorder 2, %s22
    // Predicated region
    $region93: #{text_encoder_forward.1} parent=5 // pred_check
      %p1824 = pneg %p1823
    $region94: #{text_encoder_forward.1} parent=5 // pred_check_branch
      %1826 = sbr.rel (%p1824) target = $region96
    $region95: #{text_encoder_forward.1} parent=5 // pred_region
      %s1827 = ssub.s32 %s22, 2
      // Predicated region
      $region97: #{text_encoder_forward.1} parent=95 // pred_check
        %p1828 = pneg %p466
      $region98: #{text_encoder_forward.1} parent=95 // pred_check_branch
        %1830 = sbr.rel (%p1828) target = $region100
      $region99: #{text_encoder_forward.1} parent=95 // pred_region
        %p1831 = scmp.lt.s32.totalorder %s34, 1
        %s1832 = scalar_select %p1831, %s34, 1
        %p1833 = scmp.lt.s32.totalorder %s33, 1
        %s1834 = scalar_select %p1833, %s33, 1
        %s1835 = smul.addr %s1834, 2
        %s1836 = smul.addr %s1832, 4
        %s1837 = sadd.s32 %s1835, %s1836
        %s1838 = smul.addr %s1837, 8
        %s1839 = scalar_lea.vmem %s16, %s1838
      $region100: #{text_encoder_forward.1} parent=95 // pred_fallthru
        _
    $region96: #{text_encoder_forward.1} parent=5 // pred_fallthru
      _
  $region6: #{text_encoder_forward.1} parent=0 // loop_footer
    %s26 = sadd.s32 1, %s22
  $region7: #{text_encoder_forward.1} parent=0 // loop_footer_branch
    %21 = sbr.rel target = $region3
  $region8: #{text_encoder_forward.1} parent=0 // loop_exit
    _

</llo_original>
